<compile_context>
chip_gen: v7x
topology: tpu7x:2x2x1
jax: 0.10.0
libtpu: 0.0.40
codegen_flags: <defaults>
</compile_context>

<pallas_src>
import math
import functools

import jax
import jax.numpy as jnp
from jax import lax
from jax.experimental import pallas as pl
from jax.experimental.pallas import tpu as pltpu

LN_EPS = 1e-5  # torch.nn.LayerNorm default


# ----------------------------- in-kernel helpers -----------------------------

def _layernorm(x, w, b):
    mu = jnp.mean(x, axis=-1, keepdims=True)
    var = jnp.mean((x - mu) ** 2, axis=-1, keepdims=True)
    return (x - mu) * lax.rsqrt(var + LN_EPS) * w + b


def _gelu(x):
    return 0.5 * x * (1.0 + jnp.tanh(math.sqrt(2.0 / math.pi)
                                     * (x + 0.044715 * (x ** 3))))


# ------------------------------- Pallas kernels ------------------------------

def gpt_blocks_kernel(x_ref, ln1w_ref, ln1b_ref, wqkv_ref, bqkv_ref,
                      ln2w_ref, ln2b_ref, w1_ref, b1_ref, w2_ref, b2_ref,
                      out_ref, x_acc, attn_buf, *, num_heads):
    """All L transformer blocks for one batch element.

    grid = (B, L); B is parallel, L is the sequential layer axis. The running
    activation lives in the VMEM scratch `x_acc` across the layer axis.
    """
    layer = pl.program_id(1)

    # Load the batch element's activations into the resident accumulator at l=0.
    @pl.when(layer == 0)
    def _():
        x_acc[...] = x_ref[0].astype(jnp.float32)

    x_in = x_acc[...]                         # (T, E) f32
    T, E = x_in.shape
    A = E // num_heads

    # --- attention branch ---
    xn = _layernorm(x_in, ln1w_ref[0], ln1b_ref[0])

    # One fused projection for all heads: (T,E) @ (E,3E) -> [Q | K | Vfolded]
    qkv = (jnp.dot(xn.astype(jnp.bfloat16), wqkv_ref[0],
                   preferred_element_type=jnp.float32) + bqkv_ref[0])
    qkv16 = qkv.astype(jnp.bfloat16)          # (T, 3E)

    # mask[i, j] = (j < i) -> -inf  (exactly the reference code's b < a mask)
    row = lax.broadcasted_iota(jnp.int32, (T, T), 0)
    col = lax.broadcasted_iota(jnp.int32, (T, T), 1)
    mask = col < row
    inv_sqrt_e = 1.0 / math.sqrt(E)

    for h in range(num_heads):                # static unroll; static lane slices
        q_h = qkv16[:, h * A:(h + 1) * A]
        k_h = qkv16[:, E + h * A: E + (h + 1) * A]
        v_h = qkv16[:, 2 * E + h * A: 2 * E + (h + 1) * A]

        # scores: contract head dim of q,k (NT form, no explicit transpose)
        s = lax.dot_general(q_h, k_h, (((1,), (1,)), ((), ())),
                            preferred_element_type=jnp.float32) * inv_sqrt_e
        s = jnp.where(mask, -jnp.inf, s)
        s = s - jnp.max(s, axis=-1, keepdims=True)
        p = jnp.exp(s)
        p = p * pl.reciprocal(jnp.sum(p, axis=-1, keepdims=True), approx=True)

        # write the head's (T, A) output at its static lane offset (no concat)
        attn_buf[:, h * A:(h + 1) * A] = jnp.dot(
            p.astype(jnp.bfloat16), v_h, preferred_element_type=jnp.float32)

    x1 = attn_buf[...] + x_in                 # residual 1

    # --- MLP branch ---
    xn2 = _layernorm(x1, ln2w_ref[0], ln2b_ref[0])
    hdn = (jnp.dot(xn2.astype(jnp.bfloat16), w1_ref[0],
                   preferred_element_type=jnp.float32) + b1_ref[0])
    hdn = _gelu(hdn)
    mlp = (jnp.dot(hdn.astype(jnp.bfloat16), w2_ref[0],
                   preferred_element_type=jnp.float32) + b2_ref[0])

    x_new = mlp + x1                          # residual 2
    x_acc[...] = x_new

    @pl.when(layer == pl.num_programs(1) - 1)
    def _():
        out_ref[0] = x_new.astype(out_ref.dtype)


def final_head_kernel(x_ref, lnw_ref, lnb_ref, wp_ref, bp_ref, out_ref):
    """Final LayerNorm + one vocab tile of the prediction head."""
    x = x_ref[0]                              # (T, E)
    xn = _layernorm(x, lnw_ref[...], lnb_ref[...])
    out_ref[0] = (jnp.dot(xn.astype(jnp.bfloat16), wp_ref[...],
                          preferred_element_type=jnp.float32) + bp_ref[...])


# ------------------------------ Python wrappers -------------------------------

def _merge_heads_w(w):
    # (H, E, A) -> (E, H*A), column order matches torch.cat over heads
    H, E, A = w.shape
    return jnp.transpose(w, (1, 0, 2)).reshape(E, H * A)


def _merge_heads_b(b):
    # (H, 1, A) -> (1, H*A)
    H, _, A = b.shape
    return jnp.transpose(b, (1, 0, 2)).reshape(1, H * A)


def pack_block_params(blocks):
    """Stack per-layer params, fuse Q/K/V into one wide matmul and pre-fold the
    low-rank value path. Matmul weights are cast to bf16 (MXU-native)."""
    def stack(fn):
        return jnp.stack([fn(p) for p in blocks], axis=0)

    def wqkv_of(p):
        wv = jnp.einsum('her,hra->hea', p["wvd"], p["wvu"])       # fold V
        return jnp.concatenate([_merge_heads_w(p["wq"]),
                                _merge_heads_w(p["wk"]),
                                _merge_heads_w(wv)], axis=-1)     # (E, 3E)

    def bqkv_of(p):
        bv = jnp.einsum('hor,hra->hoa', p["bvd"], p["wvu"]) + p["bvu"]
        return jnp.concatenate([_merge_heads_b(p["bq"]),
                                _merge_heads_b(p["bk"]),
                                _merge_heads_b(bv)], axis=-1)     # (1, 3E)

    return {
        "ln1_w": stack(lambda p: p["ln1_w"]),
        "ln1_b": stack(lambda p: p["ln1_b"]),
        "wqkv": stack(wqkv_of).astype(jnp.bfloat16),
        "bqkv": stack(bqkv_of),
        "ln2_w": stack(lambda p: p["ln2_w"]),
        "ln2_b": stack(lambda p: p["ln2_b"]),
        "w1": stack(lambda p: p["w1"]).astype(jnp.bfloat16),
        "b1": stack(lambda p: p["b1"]),
        "w2": stack(lambda p: p["w2"]).astype(jnp.bfloat16),
        "b2": stack(lambda p: p["b2"]),
    }


def run_gpt_blocks(x, packed, cfg):
    B, T, E = x.shape
    H = cfg["num_attention_heads"]
    names = ["ln1_w", "ln1_b", "wqkv", "bqkv",
             "ln2_w", "ln2_b", "w1", "b1", "w2", "b2"]
    weights = [packed[n] for n in names]
    L = packed["wqkv"].shape[0]

    in_specs = [pl.BlockSpec((1, T, E), lambda b, l: (b, 0, 0))]
    for w in weights:
        in_specs.append(pl.BlockSpec((1,) + w.shape[1:],
                                     lambda b, l: (l, 0, 0)))

    kernel = functools.partial(gpt_blocks_kernel, num_heads=H)
    return pl.pallas_call(
        kernel,
        out_shape=jax.ShapeDtypeStruct((B, T, E), jnp.float32),
        grid=(B, L),
        in_specs=in_specs,
        out_specs=pl.BlockSpec((1, T, E), lambda b, l: (b, 0, 0)),
        scratch_shapes=[pltpu.VMEM((T, E), jnp.float32),   # x accumulator
                        pltpu.VMEM((T, E), jnp.float32)],  # head-output buffer
        compiler_params=pltpu.CompilerParams(
            dimension_semantics=("parallel", "arbitrary")),
    )(x, *weights)


def _vocab_tile(V):
    for tv in (512, 256, 128):
        if V % tv == 0:
            return tv
    return V  # small / irregular vocab: keep it whole (still a valid block)


def run_final_head(x, params, cfg):
    B, T, E = x.shape
    V = cfg["num_distinct_tokens"]
    tv = _vocab_tile(V)
    nv = V // tv

    lnw, lnb = params["lnf_w"], params["lnf_b"]
    wp = params["wp"].astype(jnp.bfloat16)
    bp = params["bp"]

    return pl.pallas_call(
        final_head_kernel,
        out_shape=jax.ShapeDtypeStruct((B, T, V), jnp.float32),
        grid=(B, nv),
        in_specs=[pl.BlockSpec((1, T, E), lambda b, j: (b, 0, 0)),
                  pl.BlockSpec((1, E), lambda b, j: (0, 0)),
                  pl.BlockSpec((1, E), lambda b, j: (0, 0)),
                  pl.BlockSpec((E, tv), lambda b, j: (0, j)),
                  pl.BlockSpec((1, tv), lambda b, j: (0, j))],
        out_specs=pl.BlockSpec((1, T, tv), lambda b, j: (b, 0, j)),
        compiler_params=pltpu.CompilerParams(
            dimension_semantics=("parallel", "parallel")),
    )(x, lnw, lnb, wp, bp)


def gpt_forward(params, idx, cfg):
    B, T = idx.shape
    # embeddings (gather) are glue, done in plain JAX
    word_emb = params["wte"][idx]                              # (B, T, E)
    pos_emb = params["wpe"][jnp.arange(T)][None, :, :]         # (1, T, E)
    x = word_emb + pos_emb
    # embedding dropout == identity (eval mode)
    packed = pack_block_params(params["blocks"])
    x = run_gpt_blocks(x, packed, cfg)                         # all L layers fused
    logits = run_final_head(x, params, cfg)
    return logits


# ----------------------------- parameter creation -----------------------------

def init_params(key, cfg):
    E = cfg["embedding_dimension"]
    H = cfg["num_attention_heads"]
    A = E // H
    R = cfg["value_matrix_rank"]
    F = cfg["linear_layer_dimension"]
    V = cfg["num_distinct_tokens"]
    S = cfg["max_sequence_length"]
    L = cfg["num_decoder_blocks"]

    def nrm(k, shape, scale=0.02):
        return (scale * jax.random.normal(k, shape)).astype(jnp.float32)

    keys = iter(jax.random.split(key, 8 + L * 8))
    params = {
        "wte": nrm(next(keys), (V, E)),
        "wpe": nrm(next(keys), (S, E)),
        "lnf_w": jnp.ones((1, E), jnp.float32),
        "lnf_b": jnp.zeros((1, E), jnp.float32),
        "wp": nrm(next(keys), (E, V)),
        "bp": jnp.zeros((1, V), jnp.float32),
        "blocks": [],
    }
    for _ in range(L):
        blk = {
            "ln1_w": jnp.ones((1, E), jnp.float32),
            "ln1_b": jnp.zeros((1, E), jnp.float32),
            "wq": nrm(next(keys), (H, E, A)),
            "bq": jnp.zeros((H, 1, A), jnp.float32),
            "wk": nrm(next(keys), (H, E, A)),
            "bk": jnp.zeros((H, 1, A), jnp.float32),
            "wvd": nrm(next(keys), (H, E, R)),
            "bvd": jnp.zeros((H, 1, R), jnp.float32),
            "wvu": nrm(next(keys), (H, R, A)),
            "bvu": jnp.zeros((H, 1, A), jnp.float32),
            "ln2_w": jnp.ones((1, E), jnp.float32),
            "ln2_b": jnp.zeros((1, E), jnp.float32),
            "w1": nrm(next(keys), (E, F)),
            "b1": jnp.zeros((1, F), jnp.float32),
            "w2": nrm(next(keys), (F, E)),
            "b2": jnp.zeros((1, E), jnp.float32),
        }
        params["blocks"].append(blk)
    return params


# ------------------------------ pure-JAX reference -----------------------------

def ref_forward(params, idx, cfg):
    E = cfg["embedding_dimension"]
    H = cfg["num_attention_heads"]
    B, T = idx.shape
    x = params["wte"][idx] + params["wpe"][jnp.arange(T)][None]

    def ln(x, w, b):
        mu = jnp.mean(x, -1, keepdims=True)
        var = jnp.mean((x - mu) ** 2, -1, keepdims=True)
        return (x - mu) / jnp.sqrt(var + LN_EPS) * w + b

    row = jnp.arange(T)[:, None]
    col = jnp.arange(T)[None, :]
    mask = col < row

    hp = jax.lax.Precision.HIGHEST
    for p in params["blocks"]:
        y = x
        xn = ln(x, p["ln1_w"], p["ln1_b"])
        outs = []
        for h in range(H):
            q = jnp.einsum("bte,ea->bta", xn, p["wq"][h], precision=hp) + p["bq"][h]
            k = jnp.einsum("bte,ea->bta", xn, p["wk"][h], precision=hp) + p["bk"][h]
            att = jnp.einsum("bqa,bka->bqk", q, k, precision=hp) / math.sqrt(E)
            att = jnp.where(mask[None], -jnp.inf, att)
            att = jax.nn.softmax(att, axis=-1)
            v = jnp.einsum("bte,er->btr", xn, p["wvd"][h], precision=hp) + p["bvd"][h]
            v = jnp.einsum("btr,ra->bta", v, p["wvu"][h], precision=hp) + p["bvu"][h]
            outs.append(jnp.einsum("bqk,bka->bqa", att, v, precision=hp))
        x = jnp.concatenate(outs, -1) + y
        y = x
        xn = ln(x, p["ln2_w"], p["ln2_b"])
        hdn = jnp.einsum("bte,ef->btf", xn, p["w1"], precision=hp) + p["b1"]
        hdn = 0.5 * hdn * (1.0 + jnp.tanh(math.sqrt(2.0 / math.pi)
                                          * (hdn + 0.044715 * hdn ** 3)))
        x = jnp.einsum("btf,fe->bte", hdn, p["w2"], precision=hp) + p["b2"] + y
    xn = ln(x, params["lnf_w"], params["lnf_b"])
    return jnp.einsum("bte,ev->btv", xn, params["wp"], precision=hp) + params["bp"]


# ------------------------------------ main ------------------------------------

if __name__ == "__main__":
    cfg = dict(
        num_distinct_tokens=16,
        embedding_dimension=32,
        max_sequence_length=8,
        num_attention_heads=4,
        value_matrix_rank=4,
        linear_layer_dimension=64,
        num_decoder_blocks=2,
    )
    key = jax.random.PRNGKey(0)
    kp, ki = jax.random.split(key)
    params = init_params(kp, cfg)

    B, T = 2, cfg["max_sequence_length"]
    idx = jax.random.randint(ki, (B, T), 0, cfg["num_distinct_tokens"],
                             dtype=jnp.int32)

    logits = gpt_forward(params, idx, cfg)
    logits = jax.block_until_ready(logits)

    ref = ref_forward(params, idx, cfg)
    assert logits.shape == (B, T, cfg["num_distinct_tokens"])
    # tolerance accounts for bf16 MXU inputs + folded low-rank value path
    assert bool(jnp.allclose(logits, ref, atol=2e-2, rtol=2e-2))

    print("KERNEL_OK")
</pallas_src>

<mosaic_0001>
module attributes {stable_mosaic.version = 11 : i64} {
  func.func @gpt_blocks_kernel(%arg0: i32, %arg1: i32, %arg2: memref<1x8x32xf32, #tpu.memory_space<vmem>>, %arg3: memref<1x1x32xf32, #tpu.memory_space<vmem>>, %arg4: memref<1x1x32xf32, #tpu.memory_space<vmem>>, %arg5: memref<1x32x96xbf16, #tpu.memory_space<vmem>>, %arg6: memref<1x1x96xf32, #tpu.memory_space<vmem>>, %arg7: memref<1x1x32xf32, #tpu.memory_space<vmem>>, %arg8: memref<1x1x32xf32, #tpu.memory_space<vmem>>, %arg9: memref<1x32x64xbf16, #tpu.memory_space<vmem>>, %arg10: memref<1x1x64xf32, #tpu.memory_space<vmem>>, %arg11: memref<1x64x32xbf16, #tpu.memory_space<vmem>>, %arg12: memref<1x1x32xf32, #tpu.memory_space<vmem>>, %arg13: memref<1x8x32xf32, #tpu.memory_space<vmem>>, %arg14: memref<8x32xf32, #tpu.memory_space<vmem>>, %arg15: memref<8x32xf32, #tpu.memory_space<vmem>>) attributes {dimension_semantics = [#tpu.dimension_semantics<parallel>, #tpu.dimension_semantics<arbitrary>], iteration_bounds = array<i64: 2, 2>, scalar_prefetch = 0 : i64, scratch_operands = 2 : i64, tpu.core_type = #tpu.core_type<tc>, window_params = [{transform_indices = @transform_0, window_bounds = array<i64: 1, 8, 32>}, {transform_indices = @transform_1, window_bounds = array<i64: 1, 1, 32>}, {transform_indices = @transform_2, window_bounds = array<i64: 1, 1, 32>}, {transform_indices = @transform_3, window_bounds = array<i64: 1, 32, 96>}, {transform_indices = @transform_4, window_bounds = array<i64: 1, 1, 96>}, {transform_indices = @transform_5, window_bounds = array<i64: 1, 1, 32>}, {transform_indices = @transform_6, window_bounds = array<i64: 1, 1, 32>}, {transform_indices = @transform_7, window_bounds = array<i64: 1, 32, 64>}, {transform_indices = @transform_8, window_bounds = array<i64: 1, 1, 64>}, {transform_indices = @transform_9, window_bounds = array<i64: 1, 64, 32>}, {transform_indices = @transform_10, window_bounds = array<i64: 1, 1, 32>}, {transform_indices = @transform_11, window_bounds = array<i64: 1, 8, 32>}]} {
    %c0_i32 = arith.constant 0 : i32
    %0 = arith.cmpi eq, %arg1, %c0_i32 : i32
    %1 = arith.extui %0 : i1 to i32
    %c0_i32_0 = arith.constant 0 : i32
    %2 = arith.cmpi ne, %1, %c0_i32_0 : i32
    scf.if %2 {
      %c0_82 = arith.constant 0 : index
      %c0_83 = arith.constant 0 : index
      %c0_84 = arith.constant 0 : index
      %188 = vector.load %arg2[%c0_82, %c0_83, %c0_84] : memref<1x8x32xf32, #tpu.memory_space<vmem>>, vector<1x8x32xf32>
      %189 = vector.shape_cast %188 : vector<1x8x32xf32> to vector<8x32xf32>
      %c0_85 = arith.constant 0 : index
      %c0_86 = arith.constant 0 : index
      %190 = vector.load %arg14[%c0_85, %c0_86] : memref<8x32xf32, #tpu.memory_space<vmem>>, vector<8x32xf32>
      tpu.vector_store %arg14[%c0_85, %c0_86], %189 {strides = array<i32>} : memref<8x32xf32, #tpu.memory_space<vmem>>, vector<8x32xf32>,
    } else {
    }
    %c0 = arith.constant 0 : index
    %c0_1 = arith.constant 0 : index
    %3 = vector.load %arg14[%c0, %c0_1] : memref<8x32xf32, #tpu.memory_space<vmem>>, vector<8x32xf32>
    %c0_2 = arith.constant 0 : index
    %c0_3 = arith.constant 0 : index
    %c0_4 = arith.constant 0 : index
    %4 = vector.load %arg3[%c0_2, %c0_3, %c0_4] : memref<1x1x32xf32, #tpu.memory_space<vmem>>, vector<1x1x32xf32>
    %5 = vector.shape_cast %4 : vector<1x1x32xf32> to vector<1x32xf32>
    %c0_5 = arith.constant 0 : index
    %c0_6 = arith.constant 0 : index
    %c0_7 = arith.constant 0 : index
    %6 = vector.load %arg4[%c0_5, %c0_6, %c0_7] : memref<1x1x32xf32, #tpu.memory_space<vmem>>, vector<1x1x32xf32>
    %7 = vector.shape_cast %6 : vector<1x1x32xf32> to vector<1x32xf32>
    %cst = arith.constant dense<0.000000e+00> : vector<8xf32>
    %8 = vector.multi_reduction <add>, %3, %cst [1] : vector<8x32xf32> to vector<8xf32>
    %9 = vector.shape_cast %8 : vector<8xf32> to vector<8x1xf32>
    %cst_8 = arith.constant 3.200000e+01 : f32
    %10 = vector.broadcast %cst_8 : f32 to vector<8x1xf32>
    %11 = arith.divf %9, %10 : vector<8x1xf32>
    %12 = vector.broadcast %11 : vector<8x1xf32> to vector<8x32xf32>
    %13 = arith.subf %3, %12 : vector<8x32xf32>
    %14 = arith.mulf %13, %13 : vector<8x32xf32>
    %cst_9 = arith.constant dense<0.000000e+00> : vector<8xf32>
    %15 = vector.multi_reduction <add>, %14, %cst_9 [1] : vector<8x32xf32> to vector<8xf32>
    %16 = vector.shape_cast %15 : vector<8xf32> to vector<8x1xf32>
    %cst_10 = arith.constant 3.200000e+01 : f32
    %17 = vector.broadcast %cst_10 : f32 to vector<8x1xf32>
    %18 = arith.divf %16, %17 : vector<8x1xf32>
    %19 = vector.broadcast %11 : vector<8x1xf32> to vector<8x32xf32>
    %20 = arith.subf %3, %19 : vector<8x32xf32>
    %cst_11 = arith.constant 9.99999974E-6 : f32
    %21 = vector.broadcast %cst_11 : f32 to vector<8x1xf32>
    %22 = arith.addf %18, %21 : vector<8x1xf32>
    %23 = math.rsqrt %22 : vector<8x1xf32>
    %24 = vector.broadcast %23 : vector<8x1xf32> to vector<8x32xf32>
    %25 = arith.mulf %20, %24 : vector<8x32xf32>
    %26 = vector.broadcast %5 : vector<1x32xf32> to vector<8x32xf32>
    %27 = arith.mulf %25, %26 : vector<8x32xf32>
    %28 = vector.broadcast %7 : vector<1x32xf32> to vector<8x32xf32>
    %29 = arith.addf %27, %28 : vector<8x32xf32>
    %30 = arith.truncf %29 : vector<8x32xf32> to vector<8x32xbf16>
    %c0_12 = arith.constant 0 : index
    %c0_13 = arith.constant 0 : index
    %c0_14 = arith.constant 0 : index
    %31 = vector.load %arg5[%c0_12, %c0_13, %c0_14] : memref<1x32x96xbf16, #tpu.memory_space<vmem>>, vector<1x32x96xbf16>
    %32 = vector.shape_cast %31 : vector<1x32x96xbf16> to vector<32x96xbf16>
    %cst_15 = arith.constant dense<0.000000e+00> : vector<8x96xf32>
    %33 = tpu.matmul %30, %32, %cst_15 {dimension_numbers = #tpu.dot_dimension_numbers<[1], [0], [0], [1], [0, 0, 1, 1], [], []>} : vector<8x32xbf16>, vector<32x96xbf16>, vector<8x96xf32> -> vector<8x96xf32>
    %c0_16 = arith.constant 0 : index
    %c0_17 = arith.constant 0 : index
    %c0_18 = arith.constant 0 : index
    %34 = vector.load %arg6[%c0_16, %c0_17, %c0_18] : memref<1x1x96xf32, #tpu.memory_space<vmem>>, vector<1x1x96xf32>
    %35 = vector.shape_cast %34 : vector<1x1x96xf32> to vector<1x96xf32>
    %36 = vector.broadcast %35 : vector<1x96xf32> to vector<8x96xf32>
    %37 = arith.addf %33, %36 : vector<8x96xf32>
    %38 = arith.truncf %37 : vector<8x96xf32> to vector<8x96xbf16>
    %39 = tpu.iota {dimensions = array<i32: 0>} : vector<8x8xi32>
    %40 = tpu.iota {dimensions = array<i32: 1>} : vector<8x8xi32>
    %41 = arith.cmpi slt, %40, %39 : vector<8x8xi32>
    %42 = vector.extract_strided_slice %38 {offsets = [0, 0], sizes = [8, 8], strides = [1, 1]} : vector<8x96xbf16> to vector<8x8xbf16>
    %43 = vector.extract_strided_slice %38 {offsets = [0, 32], sizes = [8, 8], strides = [1, 1]} : vector<8x96xbf16> to vector<8x8xbf16>
    %44 = vector.extract_strided_slice %38 {offsets = [0, 64], sizes = [8, 8], strides = [1, 1]} : vector<8x96xbf16> to vector<8x8xbf16>
    %cst_19 = arith.constant dense<0.000000e+00> : vector<8x8xf32>
    %45 = tpu.matmul %42, %43, %cst_19 {dimension_numbers = #tpu.dot_dimension_numbers<[1], [1], [0], [0], [0, 0, 1, 0], [], []>} : vector<8x8xbf16>, vector<8x8xbf16>, vector<8x8xf32> -> vector<8x8xf32>
    %cst_20 = arith.constant 0.176776692 : f32
    %46 = vector.broadcast %cst_20 : f32 to vector<8x8xf32>
    %47 = arith.mulf %45, %46 : vector<8x8xf32>
    %cst_21 = arith.constant 0xFF800000 : f32
    %48 = vector.broadcast %cst_21 : f32 to vector<8x8xf32>
    %49 = arith.select %41, %48, %47 : vector<8x8xi1>, vector<8x8xf32>
    %cst_22 = arith.constant dense<0xFF800000> : vector<8xf32>
    %50 = vector.multi_reduction <maximumf>, %49, %cst_22 [1] : vector<8x8xf32> to vector<8xf32>
    %51 = vector.shape_cast %50 : vector<8xf32> to vector<8x1xf32>
    %52 = vector.broadcast %51 : vector<8x1xf32> to vector<8x8xf32>
    %53 = arith.subf %49, %52 : vector<8x8xf32>
    %54 = math.exp %53 : vector<8x8xf32>
    %cst_23 = arith.constant dense<0.000000e+00> : vector<8xf32>
    %55 = vector.multi_reduction <add>, %54, %cst_23 [1] : vector<8x8xf32> to vector<8xf32>
    %56 = vector.shape_cast %55 : vector<8xf32> to vector<8x1xf32>
    %57 = tpu.reciprocal %56 {approx = true} : vector<8x1xf32> -> vector<8x1xf32>
    %58 = vector.broadcast %57 : vector<8x1xf32> to vector<8x8xf32>
    %59 = arith.mulf %54, %58 : vector<8x8xf32>
    %60 = arith.truncf %59 : vector<8x8xf32> to vector<8x8xbf16>
    %cst_24 = arith.constant dense<0.000000e+00> : vector<8x8xf32>
    %61 = tpu.matmul %60, %44, %cst_24 {dimension_numbers = #tpu.dot_dimension_numbers<[1], [0], [0], [1], [0, 0, 1, 1], [], []>} : vector<8x8xbf16>, vector<8x8xbf16>, vector<8x8xf32> -> vector<8x8xf32>
    %c0_25 = arith.constant 0 : index
    %c0_26 = arith.constant 0 : index
    %62 = vector.load %arg15[%c0_25, %c0_26] : memref<8x32xf32, #tpu.memory_space<vmem>>, vector<8x8xf32>
    tpu.vector_store %arg15[%c0_25, %c0_26], %61 {strides = array<i32>} : memref<8x32xf32, #tpu.memory_space<vmem>>, vector<8x8xf32>,
    %63 = vector.extract_strided_slice %38 {offsets = [0, 8], sizes = [8, 8], strides = [1, 1]} : vector<8x96xbf16> to vector<8x8xbf16>
    %64 = vector.extract_strided_slice %38 {offsets = [0, 40], sizes = [8, 8], strides = [1, 1]} : vector<8x96xbf16> to vector<8x8xbf16>
    %65 = vector.extract_strided_slice %38 {offsets = [0, 72], sizes = [8, 8], strides = [1, 1]} : vector<8x96xbf16> to vector<8x8xbf16>
    %cst_27 = arith.constant dense<0.000000e+00> : vector<8x8xf32>
    %66 = tpu.matmul %63, %64, %cst_27 {dimension_numbers = #tpu.dot_dimension_numbers<[1], [1], [0], [0], [0, 0, 1, 0], [], []>} : vector<8x8xbf16>, vector<8x8xbf16>, vector<8x8xf32> -> vector<8x8xf32>
    %cst_28 = arith.constant 0.176776692 : f32
    %67 = vector.broadcast %cst_28 : f32 to vector<8x8xf32>
    %68 = arith.mulf %66, %67 : vector<8x8xf32>
    %cst_29 = arith.constant 0xFF800000 : f32
    %69 = vector.broadcast %cst_29 : f32 to vector<8x8xf32>
    %70 = arith.select %41, %69, %68 : vector<8x8xi1>, vector<8x8xf32>
    %cst_30 = arith.constant dense<0xFF800000> : vector<8xf32>
    %71 = vector.multi_reduction <maximumf>, %70, %cst_30 [1] : vector<8x8xf32> to vector<8xf32>
    %72 = vector.shape_cast %71 : vector<8xf32> to vector<8x1xf32>
    %73 = vector.broadcast %72 : vector<8x1xf32> to vector<8x8xf32>
    %74 = arith.subf %70, %73 : vector<8x8xf32>
    %75 = math.exp %74 : vector<8x8xf32>
    %cst_31 = arith.constant dense<0.000000e+00> : vector<8xf32>
    %76 = vector.multi_reduction <add>, %75, %cst_31 [1] : vector<8x8xf32> to vector<8xf32>
    %77 = vector.shape_cast %76 : vector<8xf32> to vector<8x1xf32>
    %78 = tpu.reciprocal %77 {approx = true} : vector<8x1xf32> -> vector<8x1xf32>
    %79 = vector.broadcast %78 : vector<8x1xf32> to vector<8x8xf32>
    %80 = arith.mulf %75, %79 : vector<8x8xf32>
    %81 = arith.truncf %80 : vector<8x8xf32> to vector<8x8xbf16>
    %cst_32 = arith.constant dense<0.000000e+00> : vector<8x8xf32>
    %82 = tpu.matmul %81, %65, %cst_32 {dimension_numbers = #tpu.dot_dimension_numbers<[1], [0], [0], [1], [0, 0, 1, 1], [], []>} : vector<8x8xbf16>, vector<8x8xbf16>, vector<8x8xf32> -> vector<8x8xf32>
    %c0_33 = arith.constant 0 : index
    %c8 = arith.constant 8 : index
    %83 = vector.load %arg15[%c0_33, %c8] : memref<8x32xf32, #tpu.memory_space<vmem>>, vector<8x8xf32>
    tpu.vector_store %arg15[%c0_33, %c8], %82 {strides = array<i32>} : memref<8x32xf32, #tpu.memory_space<vmem>>, vector<8x8xf32>,
    %84 = vector.extract_strided_slice %38 {offsets = [0, 16], sizes = [8, 8], strides = [1, 1]} : vector<8x96xbf16> to vector<8x8xbf16>
    %85 = vector.extract_strided_slice %38 {offsets = [0, 48], sizes = [8, 8], strides = [1, 1]} : vector<8x96xbf16> to vector<8x8xbf16>
    %86 = vector.extract_strided_slice %38 {offsets = [0, 80], sizes = [8, 8], strides = [1, 1]} : vector<8x96xbf16> to vector<8x8xbf16>
    %cst_34 = arith.constant dense<0.000000e+00> : vector<8x8xf32>
    %87 = tpu.matmul %84, %85, %cst_34 {dimension_numbers = #tpu.dot_dimension_numbers<[1], [1], [0], [0], [0, 0, 1, 0], [], []>} : vector<8x8xbf16>, vector<8x8xbf16>, vector<8x8xf32> -> vector<8x8xf32>
    %cst_35 = arith.constant 0.176776692 : f32
    %88 = vector.broadcast %cst_35 : f32 to vector<8x8xf32>
    %89 = arith.mulf %87, %88 : vector<8x8xf32>
    %cst_36 = arith.constant 0xFF800000 : f32
    %90 = vector.broadcast %cst_36 : f32 to vector<8x8xf32>
    %91 = arith.select %41, %90, %89 : vector<8x8xi1>, vector<8x8xf32>
    %cst_37 = arith.constant dense<0xFF800000> : vector<8xf32>
    %92 = vector.multi_reduction <maximumf>, %91, %cst_37 [1] : vector<8x8xf32> to vector<8xf32>
    %93 = vector.shape_cast %92 : vector<8xf32> to vector<8x1xf32>
    %94 = vector.broadcast %93 : vector<8x1xf32> to vector<8x8xf32>
    %95 = arith.subf %91, %94 : vector<8x8xf32>
    %96 = math.exp %95 : vector<8x8xf32>
    %cst_38 = arith.constant dense<0.000000e+00> : vector<8xf32>
    %97 = vector.multi_reduction <add>, %96, %cst_38 [1] : vector<8x8xf32> to vector<8xf32>
    %98 = vector.shape_cast %97 : vector<8xf32> to vector<8x1xf32>
    %99 = tpu.reciprocal %98 {approx = true} : vector<8x1xf32> -> vector<8x1xf32>
    %100 = vector.broadcast %99 : vector<8x1xf32> to vector<8x8xf32>
    %101 = arith.mulf %96, %100 : vector<8x8xf32>
    %102 = arith.truncf %101 : vector<8x8xf32> to vector<8x8xbf16>
    %cst_39 = arith.constant dense<0.000000e+00> : vector<8x8xf32>
    %103 = tpu.matmul %102, %86, %cst_39 {dimension_numbers = #tpu.dot_dimension_numbers<[1], [0], [0], [1], [0, 0, 1, 1], [], []>} : vector<8x8xbf16>, vector<8x8xbf16>, vector<8x8xf32> -> vector<8x8xf32>
    %c0_40 = arith.constant 0 : index
    %c16 = arith.constant 16 : index
    %104 = vector.load %arg15[%c0_40, %c16] : memref<8x32xf32, #tpu.memory_space<vmem>>, vector<8x8xf32>
    tpu.vector_store %arg15[%c0_40, %c16], %103 {strides = array<i32>} : memref<8x32xf32, #tpu.memory_space<vmem>>, vector<8x8xf32>,
    %105 = vector.extract_strided_slice %38 {offsets = [0, 24], sizes = [8, 8], strides = [1, 1]} : vector<8x96xbf16> to vector<8x8xbf16>
    %106 = vector.extract_strided_slice %38 {offsets = [0, 56], sizes = [8, 8], strides = [1, 1]} : vector<8x96xbf16> to vector<8x8xbf16>
    %107 = vector.extract_strided_slice %38 {offsets = [0, 88], sizes = [8, 8], strides = [1, 1]} : vector<8x96xbf16> to vector<8x8xbf16>
    %cst_41 = arith.constant dense<0.000000e+00> : vector<8x8xf32>
    %108 = tpu.matmul %105, %106, %cst_41 {dimension_numbers = #tpu.dot_dimension_numbers<[1], [1], [0], [0], [0, 0, 1, 0], [], []>} : vector<8x8xbf16>, vector<8x8xbf16>, vector<8x8xf32> -> vector<8x8xf32>
    %cst_42 = arith.constant 0.176776692 : f32
    %109 = vector.broadcast %cst_42 : f32 to vector<8x8xf32>
    %110 = arith.mulf %108, %109 : vector<8x8xf32>
    %cst_43 = arith.constant 0xFF800000 : f32
    %111 = vector.broadcast %cst_43 : f32 to vector<8x8xf32>
    %112 = arith.select %41, %111, %110 : vector<8x8xi1>, vector<8x8xf32>
    %cst_44 = arith.constant dense<0xFF800000> : vector<8xf32>
    %113 = vector.multi_reduction <maximumf>, %112, %cst_44 [1] : vector<8x8xf32> to vector<8xf32>
    %114 = vector.shape_cast %113 : vector<8xf32> to vector<8x1xf32>
    %115 = vector.broadcast %114 : vector<8x1xf32> to vector<8x8xf32>
    %116 = arith.subf %112, %115 : vector<8x8xf32>
    %117 = math.exp %116 : vector<8x8xf32>
    %cst_45 = arith.constant dense<0.000000e+00> : vector<8xf32>
    %118 = vector.multi_reduction <add>, %117, %cst_45 [1] : vector<8x8xf32> to vector<8xf32>
    %119 = vector.shape_cast %118 : vector<8xf32> to vector<8x1xf32>
    %120 = tpu.reciprocal %119 {approx = true} : vector<8x1xf32> -> vector<8x1xf32>
    %121 = vector.broadcast %120 : vector<8x1xf32> to vector<8x8xf32>
    %122 = arith.mulf %117, %121 : vector<8x8xf32>
    %123 = arith.truncf %122 : vector<8x8xf32> to vector<8x8xbf16>
    %cst_46 = arith.constant dense<0.000000e+00> : vector<8x8xf32>
    %124 = tpu.matmul %123, %107, %cst_46 {dimension_numbers = #tpu.dot_dimension_numbers<[1], [0], [0], [1], [0, 0, 1, 1], [], []>} : vector<8x8xbf16>, vector<8x8xbf16>, vector<8x8xf32> -> vector<8x8xf32>
    %c0_47 = arith.constant 0 : index
    %c24 = arith.constant 24 : index
    %125 = vector.load %arg15[%c0_47, %c24] : memref<8x32xf32, #tpu.memory_space<vmem>>, vector<8x8xf32>
    tpu.vector_store %arg15[%c0_47, %c24], %124 {strides = array<i32>} : memref<8x32xf32, #tpu.memory_space<vmem>>, vector<8x8xf32>,
    %c0_48 = arith.constant 0 : index
    %c0_49 = arith.constant 0 : index
    %126 = vector.load %arg15[%c0_48, %c0_49] : memref<8x32xf32, #tpu.memory_space<vmem>>, vector<8x32xf32>
    %127 = arith.addf %126, %3 : vector<8x32xf32>
    %c0_50 = arith.constant 0 : index
    %c0_51 = arith.constant 0 : index
    %c0_52 = arith.constant 0 : index
    %128 = vector.load %arg7[%c0_50, %c0_51, %c0_52] : memref<1x1x32xf32, #tpu.memory_space<vmem>>, vector<1x1x32xf32>
    %129 = vector.shape_cast %128 : vector<1x1x32xf32> to vector<1x32xf32>
    %c0_53 = arith.constant 0 : index
    %c0_54 = arith.constant 0 : index
    %c0_55 = arith.constant 0 : index
    %130 = vector.load %arg8[%c0_53, %c0_54, %c0_55] : memref<1x1x32xf32, #tpu.memory_space<vmem>>, vector<1x1x32xf32>
    %131 = vector.shape_cast %130 : vector<1x1x32xf32> to vector<1x32xf32>
    %cst_56 = arith.constant dense<0.000000e+00> : vector<8xf32>
    %132 = vector.multi_reduction <add>, %127, %cst_56 [1] : vector<8x32xf32> to vector<8xf32>
    %133 = vector.shape_cast %132 : vector<8xf32> to vector<8x1xf32>
    %cst_57 = arith.constant 3.200000e+01 : f32
    %134 = vector.broadcast %cst_57 : f32 to vector<8x1xf32>
    %135 = arith.divf %133, %134 : vector<8x1xf32>
    %136 = vector.broadcast %135 : vector<8x1xf32> to vector<8x32xf32>
    %137 = arith.subf %127, %136 : vector<8x32xf32>
    %138 = arith.mulf %137, %137 : vector<8x32xf32>
    %cst_58 = arith.constant dense<0.000000e+00> : vector<8xf32>
    %139 = vector.multi_reduction <add>, %138, %cst_58 [1] : vector<8x32xf32> to vector<8xf32>
    %140 = vector.shape_cast %139 : vector<8xf32> to vector<8x1xf32>
    %cst_59 = arith.constant 3.200000e+01 : f32
    %141 = vector.broadcast %cst_59 : f32 to vector<8x1xf32>
    %142 = arith.divf %140, %141 : vector<8x1xf32>
    %143 = vector.broadcast %135 : vector<8x1xf32> to vector<8x32xf32>
    %144 = arith.subf %127, %143 : vector<8x32xf32>
    %cst_60 = arith.constant 9.99999974E-6 : f32
    %145 = vector.broadcast %cst_60 : f32 to vector<8x1xf32>
    %146 = arith.addf %142, %145 : vector<8x1xf32>
    %147 = math.rsqrt %146 : vector<8x1xf32>
    %148 = vector.broadcast %147 : vector<8x1xf32> to vector<8x32xf32>
    %149 = arith.mulf %144, %148 : vector<8x32xf32>
    %150 = vector.broadcast %129 : vector<1x32xf32> to vector<8x32xf32>
    %151 = arith.mulf %149, %150 : vector<8x32xf32>
    %152 = vector.broadcast %131 : vector<1x32xf32> to vector<8x32xf32>
    %153 = arith.addf %151, %152 : vector<8x32xf32>
    %154 = arith.truncf %153 : vector<8x32xf32> to vector<8x32xbf16>
    %c0_61 = arith.constant 0 : index
    %c0_62 = arith.constant 0 : index
    %c0_63 = arith.constant 0 : index
    %155 = vector.load %arg9[%c0_61, %c0_62, %c0_63] : memref<1x32x64xbf16, #tpu.memory_space<vmem>>, vector<1x32x64xbf16>
    %156 = vector.shape_cast %155 : vector<1x32x64xbf16> to vector<32x64xbf16>
    %cst_64 = arith.constant dense<0.000000e+00> : vector<8x64xf32>
    %157 = tpu.matmul %154, %156, %cst_64 {dimension_numbers = #tpu.dot_dimension_numbers<[1], [0], [0], [1], [0, 0, 1, 1], [], []>} : vector<8x32xbf16>, vector<32x64xbf16>, vector<8x64xf32> -> vector<8x64xf32>
    %c0_65 = arith.constant 0 : index
    %c0_66 = arith.constant 0 : index
    %c0_67 = arith.constant 0 : index
    %158 = vector.load %arg10[%c0_65, %c0_66, %c0_67] : memref<1x1x64xf32, #tpu.memory_space<vmem>>, vector<1x1x64xf32>
    %159 = vector.shape_cast %158 : vector<1x1x64xf32> to vector<1x64xf32>
    %160 = vector.broadcast %159 : vector<1x64xf32> to vector<8x64xf32>
    %161 = arith.addf %157, %160 : vector<8x64xf32>
    %cst_68 = arith.constant 5.000000e-01 : f32
    %162 = vector.broadcast %cst_68 : f32 to vector<8x64xf32>
    %163 = arith.mulf %162, %161 : vector<8x64xf32>
    %164 = arith.mulf %161, %161 : vector<8x64xf32>
    %165 = arith.mulf %161, %164 : vector<8x64xf32>
    %cst_69 = arith.constant 4.471500e-02 : f32
    %166 = vector.broadcast %cst_69 : f32 to vector<8x64xf32>
    %167 = arith.mulf %166, %165 : vector<8x64xf32>
    %168 = arith.addf %161, %167 : vector<8x64xf32>
    %cst_70 = arith.constant 0.797884583 : f32
    %169 = vector.broadcast %cst_70 : f32 to vector<8x64xf32>
    %170 = arith.mulf %169, %168 : vector<8x64xf32>
    %171 = math.tanh %170 : vector<8x64xf32>
    %cst_71 = arith.constant 1.000000e+00 : f32
    %172 = vector.broadcast %cst_71 : f32 to vector<8x64xf32>
    %173 = arith.addf %172, %171 : vector<8x64xf32>
    %174 = arith.mulf %163, %173 : vector<8x64xf32>
    %175 = arith.truncf %174 : vector<8x64xf32> to vector<8x64xbf16>
    %c0_72 = arith.constant 0 : index
    %c0_73 = arith.constant 0 : index
    %c0_74 = arith.constant 0 : index
    %176 = vector.load %arg11[%c0_72, %c0_73, %c0_74] : memref<1x64x32xbf16, #tpu.memory_space<vmem>>, vector<1x64x32xbf16>
    %177 = vector.shape_cast %176 : vector<1x64x32xbf16> to vector<64x32xbf16>
    %cst_75 = arith.constant dense<0.000000e+00> : vector<8x32xf32>
    %178 = tpu.matmul %175, %177, %cst_75 {dimension_numbers = #tpu.dot_dimension_numbers<[1], [0], [0], [1], [0, 0, 1, 1], [], []>} : vector<8x64xbf16>, vector<64x32xbf16>, vector<8x32xf32> -> vector<8x32xf32>
    %c0_76 = arith.constant 0 : index
    %c0_77 = arith.constant 0 : index
    %c0_78 = arith.constant 0 : index
    %179 = vector.load %arg12[%c0_76, %c0_77, %c0_78] : memref<1x1x32xf32, #tpu.memory_space<vmem>>, vector<1x1x32xf32>
    %180 = vector.shape_cast %179 : vector<1x1x32xf32> to vector<1x32xf32>
    %181 = vector.broadcast %180 : vector<1x32xf32> to vector<8x32xf32>
    %182 = arith.addf %178, %181 : vector<8x32xf32>
    %183 = arith.addf %182, %127 : vector<8x32xf32>
    %c0_79 = arith.constant 0 : index
    %c0_80 = arith.constant 0 : index
    %184 = vector.load %arg14[%c0_79, %c0_80] : memref<8x32xf32, #tpu.memory_space<vmem>>, vector<8x32xf32>
    tpu.vector_store %arg14[%c0_79, %c0_80], %183 {strides = array<i32>} : memref<8x32xf32, #tpu.memory_space<vmem>>, vector<8x32xf32>,
    %c1_i32 = arith.constant 1 : i32
    %185 = arith.cmpi eq, %arg1, %c1_i32 : i32
    %186 = arith.extui %185 : i1 to i32
    %c0_i32_81 = arith.constant 0 : i32
    %187 = arith.cmpi ne, %186, %c0_i32_81 : i32
    scf.if %187 {
      %c0_82 = arith.constant 0 : index
      %c0_83 = arith.constant 0 : index
      %c0_84 = arith.constant 0 : index
      %188 = vector.load %arg13[%c0_82, %c0_83, %c0_84] : memref<1x8x32xf32, #tpu.memory_space<vmem>>, vector<1x8x32xf32>
      %189 = vector.shape_cast %188 : vector<1x8x32xf32> to vector<8x32xf32>
      %190 = vector.shape_cast %183 : vector<8x32xf32> to vector<1x8x32xf32>
      tpu.vector_store %arg13[%c0_82, %c0_83, %c0_84], %190 {strides = array<i32>} : memref<1x8x32xf32, #tpu.memory_space<vmem>>, vector<1x8x32xf32>,
    } else {
    }
    return
  }
  func.func @transform_0(%arg0: i32, %arg1: i32) -> (i32, i32, i32) {
    %c0_i32 = arith.constant 0 : i32
    %c0_i32_0 = arith.constant 0 : i32
    %c0_i32_1 = arith.constant 0 : i32
    return %arg0, %c0_i32, %c0_i32_0 : i32, i32, i32
  }
  func.func @transform_1(%arg0: i32, %arg1: i32) -> (i32, i32, i32) {
    %c0_i32 = arith.constant 0 : i32
    %c0_i32_0 = arith.constant 0 : i32
    %c0_i32_1 = arith.constant 0 : i32
    return %arg1, %c0_i32, %c0_i32_0 : i32, i32, i32
  }
  func.func @transform_2(%arg0: i32, %arg1: i32) -> (i32, i32, i32) {
    %c0_i32 = arith.constant 0 : i32
    %c0_i32_0 = arith.constant 0 : i32
    %c0_i32_1 = arith.constant 0 : i32
    return %arg1, %c0_i32, %c0_i32_0 : i32, i32, i32
  }
  func.func @transform_3(%arg0: i32, %arg1: i32) -> (i32, i32, i32) {
    %c0_i32 = arith.constant 0 : i32
    %c0_i32_0 = arith.constant 0 : i32
    %c0_i32_1 = arith.constant 0 : i32
    return %arg1, %c0_i32, %c0_i32_0 : i32, i32, i32
  }
  func.func @transform_4(%arg0: i32, %arg1: i32) -> (i32, i32, i32) {
    %c0_i32 = arith.constant 0 : i32
    %c0_i32_0 = arith.constant 0 : i32
    %c0_i32_1 = arith.constant 0 : i32
    return %arg1, %c0_i32, %c0_i32_0 : i32, i32, i32
  }
  func.func @transform_5(%arg0: i32, %arg1: i32) -> (i32, i32, i32) {
    %c0_i32 = arith.constant 0 : i32
    %c0_i32_0 = arith.constant 0 : i32
    %c0_i32_1 = arith.constant 0 : i32
    return %arg1, %c0_i32, %c0_i32_0 : i32, i32, i32
  }
  func.func @transform_6(%arg0: i32, %arg1: i32) -> (i32, i32, i32) {
    %c0_i32 = arith.constant 0 : i32
    %c0_i32_0 = arith.constant 0 : i32
    %c0_i32_1 = arith.constant 0 : i32
    return %arg1, %c0_i32, %c0_i32_0 : i32, i32, i32
  }
  func.func @transform_7(%arg0: i32, %arg1: i32) -> (i32, i32, i32) {
    %c0_i32 = arith.constant 0 : i32
    %c0_i32_0 = arith.constant 0 : i32
    %c0_i32_1 = arith.constant 0 : i32
    return %arg1, %c0_i32, %c0_i32_0 : i32, i32, i32
  }
  func.func @transform_8(%arg0: i32, %arg1: i32) -> (i32, i32, i32) {
    %c0_i32 = arith.constant 0 : i32
    %c0_i32_0 = arith.constant 0 : i32
    %c0_i32_1 = arith.constant 0 : i32
    return %arg1, %c0_i32, %c0_i32_0 : i32, i32, i32
  }
  func.func @transform_9(%arg0: i32, %arg1: i32) -> (i32, i32, i32) {
    %c0_i32 = arith.constant 0 : i32
    %c0_i32_0 = arith.constant 0 : i32
    %c0_i32_1 = arith.constant 0 : i32
    return %arg1, %c0_i32, %c0_i32_0 : i32, i32, i32
  }
  func.func @transform_10(%arg0: i32, %arg1: i32) -> (i32, i32, i32) {
    %c0_i32 = arith.constant 0 : i32
    %c0_i32_0 = arith.constant 0 : i32
    %c0_i32_1 = arith.constant 0 : i32
    return %arg1, %c0_i32, %c0_i32_0 : i32, i32, i32
  }
  func.func @transform_11(%arg0: i32, %arg1: i32) -> (i32, i32, i32) {
    %c0_i32 = arith.constant 0 : i32
    %c0_i32_0 = arith.constant 0 : i32
    %c0_i32_1 = arith.constant 0 : i32
    return %arg0, %c0_i32, %c0_i32_0 : i32, i32, i32
  }
}

</mosaic_0001>

<llo_original>
// kernel: tpu_custom_call.1
$region0: #{tpu_custom_call.1}
  #allocation0 [shape = 'u32[]', space=smem, size = 0x4, offset = 0x4, fixed_abs, tag = 'smem constant byte address 0x4 - core index']
  #allocation1 [shape = 'u32[144,128]{1,0:T(1,128)}', space=vmem, size = 0x12000, scoped, tag = 'internal scratch']
  #allocation2 [shape = 'f32[8,32]{1,0:T(8,128)}', space=vmem, size = 0x1000, scoped, tag = 'scratch operand']
  #allocation3 [shape = 'f32[8,32]{1,0:T(8,128)}', space=vmem, size = 0x1000, scoped, tag = 'scratch operand']
  %s0 = inlined_call_operand.vmem [shape: f32[2,8,32], index: 0, kind: input, shape index: {}]
  %s1 = inlined_call_operand.vmem [shape: f32[2,1,32], index: 1, kind: input, shape index: {}]
  %s2 = inlined_call_operand.vmem [shape: f32[2,1,32], index: 2, kind: input, shape index: {}]
  %s3 = inlined_call_operand.vmem [shape: bf16[2,32,96], index: 3, kind: input, shape index: {}]
  %s4 = inlined_call_operand.vmem [shape: f32[2,1,96], index: 4, kind: input, shape index: {}]
  %s5 = inlined_call_operand.vmem [shape: f32[2,1,32], index: 5, kind: input, shape index: {}]
  %s6 = inlined_call_operand.vmem [shape: f32[2,1,32], index: 6, kind: input, shape index: {}]
  %s7 = inlined_call_operand.vmem [shape: bf16[2,32,64], index: 7, kind: input, shape index: {}]
  %s8 = inlined_call_operand.vmem [shape: f32[2,1,64], index: 8, kind: input, shape index: {}]
  %s9 = inlined_call_operand.vmem [shape: bf16[2,64,32], index: 9, kind: input, shape index: {}]
  %s10 = inlined_call_operand.vmem [shape: f32[2,1,32], index: 10, kind: input, shape index: {}]
  %s11 = inlined_call_operand.hbm [shape: f32[2,8,32], index: 11, kind: output, shape index: {}]
  %s12 = sld [smem:[#allocation0]]
  $region85: #{tpu_custom_call.1} parent=0
    _
  %s14 = ssub.s32 1, %s12
  %s15 = scalar_select 0, %s14, %s12
  $region1: #{tpu_custom_call.1} parent=0
    #allocation4 [shape = 'u8[8192]{0}', space=vmem, size = 0x2000, scoped, tag = 'output window, operand 0']
    #allocation5 [shape = 's32[2]{0}', space=sflag, size = 0x8, scoped, tag = 'scoped memory for tpu_custom_call.1']
    %16 = vsyncpa [#allocation5], 0
    %s17 = scalar_lea.sflag [#allocation5], 1
    %18 = vsyncpa %s17, 0
    loop: start=0, step=1, limit=6
    $region2: #{tpu_custom_call.1} parent=1 // loop_pre_header
      _
    $region3: #{tpu_custom_call.1} parent=1 // loop_header
      %s20 = sphi 0, %s24
      %p21 = scmp.ge.s32.totalorder %s20, 6
      %s27 = sphi 0, %s39
      %s28 = sphi 0, %s35
      %s29 = sphi 0, %s27
      %s30 = sphi 0, %s28
      %s31 = sphi 0, %s29
      %s32 = sphi 0, %s30
      %s42 = sphi 0, %s44
      %s45 = sphi 0, %s42
      %s46 = sphi 0, %s45
      %s62 = sphi 0, %s46
      %s68 = sphi 0, %s70
      %s71 = sphi 0, %s68
      %s72 = sphi 0, %s71
      %s88 = sphi 0, %s72
      %s94 = sphi 0, %s96
      %s97 = sphi 0, %s94
      %s98 = sphi 0, %s97
      %s114 = sphi 0, %s98
      %s120 = sphi 0, %s122
      %s123 = sphi 0, %s120
      %s124 = sphi 0, %s123
      %s140 = sphi 0, %s124
      %s146 = sphi 0, %s148
      %s149 = sphi 0, %s146
      %s150 = sphi 0, %s149
      %s166 = sphi 0, %s150
      %s172 = sphi 0, %s174
      %s175 = sphi 0, %s172
      %s176 = sphi 0, %s175
      %s192 = sphi 0, %s176
      %s198 = sphi 0, %s200
      %s201 = sphi 0, %s198
      %s202 = sphi 0, %s201
      %s218 = sphi 0, %s202
      %s224 = sphi 0, %s226
      %s227 = sphi 0, %s224
      %s228 = sphi 0, %s227
      %s244 = sphi 0, %s228
      %s250 = sphi 0, %s252
      %s253 = sphi 0, %s250
      %s254 = sphi 0, %s253
      %s270 = sphi 0, %s254
      %s276 = sphi 0, %s278
      %s279 = sphi 0, %s276
      %s280 = sphi 0, %s279
      %s296 = sphi 0, %s280
      %s302 = sphi 0, %s304
      %s305 = sphi 0, %s302
      %s306 = sphi 0, %s305
      %s322 = sphi 0, %s306
      %s328 = sphi 0, %s330
      %s331 = sphi 0, %s328
      %s332 = sphi 0, %s331
      %s348 = sphi 0, %s332
    $region4: #{tpu_custom_call.1} parent=1 // loop_header_branch
      %23 = sbr.rel (%p21) target = $region8
    $region5: #{tpu_custom_call.1} parent=1 // loop_body
      %s25 = ssub.s32 %s20, 1
      %s26 = ssub.s32 %s20, 2
      %s33 = sadd.s32 1, %s28
      %p34 = scmp.ge.s32.totalorder %s33, 2
      %s35 = scalar_select %p34, 0, %s33
      %s36 = sadd.s32 1, %s27
      %s37 = scalar_select %p34, %s36, %s27
      %p38 = scmp.ge.s32.totalorder %s37, 2
      %s39 = scalar_select %p38, 0, %s37
      %s40 = ssub.s32 %s27, %s39
      %p41 = scmp.eq.s32.totalorder %s40, 0
      %s43 = sadd.s32 %s42, 1
      %s44 = scalar_select %p41, %s42, %s43
      %p47 = pneg %p41
      %p48 = scmp.eq.s32.totalorder %s20, 3
      %p49 = por %p47, %p48
      %p50 = scmp.ne.s32.totalorder %s42, %s45
      %p51 = scmp.eq.s32.totalorder %s20, 0
      %p52 = por %p50, %p51
      %p53 = scmp.ne.s32.totalorder %s42, %s45
      %p54 = scmp.eq.s32.totalorder %s25, 3
      %p55 = por %p53, %p54
      %p56 = scmp.ne.s32.totalorder %s45, %s46
      %p57 = scmp.eq.s32.totalorder %s25, 0
      %p58 = por %p56, %p57
      %p59 = scmp.ne.s32.totalorder %s45, %s46
      %p60 = scmp.eq.s32.totalorder %s26, 3
      %p61 = por %p59, %p60
      %p63 = scmp.ne.s32.totalorder %s46, %s62
      %p64 = scmp.eq.s32.totalorder %s26, 0
      %p65 = por %p63, %p64
      %s66 = ssub.s32 %s28, %s35
      %p67 = scmp.eq.s32.totalorder %s66, 0
      %s69 = sadd.s32 %s68, 1
      %s70 = scalar_select %p67, %s68, %s69
      %p73 = pneg %p67
      %p74 = scmp.eq.s32.totalorder %s20, 3
      %p75 = por %p73, %p74
      %p76 = scmp.ne.s32.totalorder %s68, %s71
      %p77 = scmp.eq.s32.totalorder %s20, 0
      %p78 = por %p76, %p77
      %p79 = scmp.ne.s32.totalorder %s68, %s71
      %p80 = scmp.eq.s32.totalorder %s25, 3
      %p81 = por %p79, %p80
      %p82 = scmp.ne.s32.totalorder %s71, %s72
      %p83 = scmp.eq.s32.totalorder %s25, 0
      %p84 = por %p82, %p83
      %p85 = scmp.ne.s32.totalorder %s71, %s72
      %p86 = scmp.eq.s32.totalorder %s26, 3
      %p87 = por %p85, %p86
      %p89 = scmp.ne.s32.totalorder %s72, %s88
      %p90 = scmp.eq.s32.totalorder %s26, 0
      %p91 = por %p89, %p90
      %s92 = ssub.s32 %s28, %s35
      %p93 = scmp.eq.s32.totalorder %s92, 0
      %s95 = sadd.s32 %s94, 1
      %s96 = scalar_select %p93, %s94, %s95
      %p99 = pneg %p93
      %p100 = scmp.eq.s32.totalorder %s20, 3
      %p101 = por %p99, %p100
      %p102 = scmp.ne.s32.totalorder %s94, %s97
      %p103 = scmp.eq.s32.totalorder %s20, 0
      %p104 = por %p102, %p103
      %p105 = scmp.ne.s32.totalorder %s94, %s97
      %p106 = scmp.eq.s32.totalorder %s25, 3
      %p107 = por %p105, %p106
      %p108 = scmp.ne.s32.totalorder %s97, %s98
      %p109 = scmp.eq.s32.totalorder %s25, 0
      %p110 = por %p108, %p109
      %p111 = scmp.ne.s32.totalorder %s97, %s98
      %p112 = scmp.eq.s32.totalorder %s26, 3
      %p113 = por %p111, %p112
      %p115 = scmp.ne.s32.totalorder %s98, %s114
      %p116 = scmp.eq.s32.totalorder %s26, 0
      %p117 = por %p115, %p116
      %s118 = ssub.s32 %s28, %s35
      %p119 = scmp.eq.s32.totalorder %s118, 0
      %s121 = sadd.s32 %s120, 1
      %s122 = scalar_select %p119, %s120, %s121
      %p125 = pneg %p119
      %p126 = scmp.eq.s32.totalorder %s20, 3
      %p127 = por %p125, %p126
      %p128 = scmp.ne.s32.totalorder %s120, %s123
      %p129 = scmp.eq.s32.totalorder %s20, 0
      %p130 = por %p128, %p129
      %p131 = scmp.ne.s32.totalorder %s120, %s123
      %p132 = scmp.eq.s32.totalorder %s25, 3
      %p133 = por %p131, %p132
      %p134 = scmp.ne.s32.totalorder %s123, %s124
      %p135 = scmp.eq.s32.totalorder %s25, 0
      %p136 = por %p134, %p135
      %p137 = scmp.ne.s32.totalorder %s123, %s124
      %p138 = scmp.eq.s32.totalorder %s26, 3
      %p139 = por %p137, %p138
      %p141 = scmp.ne.s32.totalorder %s124, %s140
      %p142 = scmp.eq.s32.totalorder %s26, 0
      %p143 = por %p141, %p142
      %s144 = ssub.s32 %s28, %s35
      %p145 = scmp.eq.s32.totalorder %s144, 0
      %s147 = sadd.s32 %s146, 1
      %s148 = scalar_select %p145, %s146, %s147
      %p151 = pneg %p145
      %p152 = scmp.eq.s32.totalorder %s20, 3
      %p153 = por %p151, %p152
      %p154 = scmp.ne.s32.totalorder %s146, %s149
      %p155 = scmp.eq.s32.totalorder %s20, 0
      %p156 = por %p154, %p155
      %p157 = scmp.ne.s32.totalorder %s146, %s149
      %p158 = scmp.eq.s32.totalorder %s25, 3
      %p159 = por %p157, %p158
      %p160 = scmp.ne.s32.totalorder %s149, %s150
      %p161 = scmp.eq.s32.totalorder %s25, 0
      %p162 = por %p160, %p161
      %p163 = scmp.ne.s32.totalorder %s149, %s150
      %p164 = scmp.eq.s32.totalorder %s26, 3
      %p165 = por %p163, %p164
      %p167 = scmp.ne.s32.totalorder %s150, %s166
      %p168 = scmp.eq.s32.totalorder %s26, 0
      %p169 = por %p167, %p168
      %s170 = ssub.s32 %s28, %s35
      %p171 = scmp.eq.s32.totalorder %s170, 0
      %s173 = sadd.s32 %s172, 1
      %s174 = scalar_select %p171, %s172, %s173
      %p177 = pneg %p171
      %p178 = scmp.eq.s32.totalorder %s20, 3
      %p179 = por %p177, %p178
      %p180 = scmp.ne.s32.totalorder %s172, %s175
      %p181 = scmp.eq.s32.totalorder %s20, 0
      %p182 = por %p180, %p181
      %p183 = scmp.ne.s32.totalorder %s172, %s175
      %p184 = scmp.eq.s32.totalorder %s25, 3
      %p185 = por %p183, %p184
      %p186 = scmp.ne.s32.totalorder %s175, %s176
      %p187 = scmp.eq.s32.totalorder %s25, 0
      %p188 = por %p186, %p187
      %p189 = scmp.ne.s32.totalorder %s175, %s176
      %p190 = scmp.eq.s32.totalorder %s26, 3
      %p191 = por %p189, %p190
      %p193 = scmp.ne.s32.totalorder %s176, %s192
      %p194 = scmp.eq.s32.totalorder %s26, 0
      %p195 = por %p193, %p194
      %s196 = ssub.s32 %s28, %s35
      %p197 = scmp.eq.s32.totalorder %s196, 0
      %s199 = sadd.s32 %s198, 1
      %s200 = scalar_select %p197, %s198, %s199
      %p203 = pneg %p197
      %p204 = scmp.eq.s32.totalorder %s20, 3
      %p205 = por %p203, %p204
      %p206 = scmp.ne.s32.totalorder %s198, %s201
      %p207 = scmp.eq.s32.totalorder %s20, 0
      %p208 = por %p206, %p207
      %p209 = scmp.ne.s32.totalorder %s198, %s201
      %p210 = scmp.eq.s32.totalorder %s25, 3
      %p211 = por %p209, %p210
      %p212 = scmp.ne.s32.totalorder %s201, %s202
      %p213 = scmp.eq.s32.totalorder %s25, 0
      %p214 = por %p212, %p213
      %p215 = scmp.ne.s32.totalorder %s201, %s202
      %p216 = scmp.eq.s32.totalorder %s26, 3
      %p217 = por %p215, %p216
      %p219 = scmp.ne.s32.totalorder %s202, %s218
      %p220 = scmp.eq.s32.totalorder %s26, 0
      %p221 = por %p219, %p220
      %s222 = ssub.s32 %s28, %s35
      %p223 = scmp.eq.s32.totalorder %s222, 0
      %s225 = sadd.s32 %s224, 1
      %s226 = scalar_select %p223, %s224, %s225
      %p229 = pneg %p223
      %p230 = scmp.eq.s32.totalorder %s20, 3
      %p231 = por %p229, %p230
      %p232 = scmp.ne.s32.totalorder %s224, %s227
      %p233 = scmp.eq.s32.totalorder %s20, 0
      %p234 = por %p232, %p233
      %p235 = scmp.ne.s32.totalorder %s224, %s227
      %p236 = scmp.eq.s32.totalorder %s25, 3
      %p237 = por %p235, %p236
      %p238 = scmp.ne.s32.totalorder %s227, %s228
      %p239 = scmp.eq.s32.totalorder %s25, 0
      %p240 = por %p238, %p239
      %p241 = scmp.ne.s32.totalorder %s227, %s228
      %p242 = scmp.eq.s32.totalorder %s26, 3
      %p243 = por %p241, %p242
      %p245 = scmp.ne.s32.totalorder %s228, %s244
      %p246 = scmp.eq.s32.totalorder %s26, 0
      %p247 = por %p245, %p246
      %s248 = ssub.s32 %s28, %s35
      %p249 = scmp.eq.s32.totalorder %s248, 0
      %s251 = sadd.s32 %s250, 1
      %s252 = scalar_select %p249, %s250, %s251
      %p255 = pneg %p249
      %p256 = scmp.eq.s32.totalorder %s20, 3
      %p257 = por %p255, %p256
      %p258 = scmp.ne.s32.totalorder %s250, %s253
      %p259 = scmp.eq.s32.totalorder %s20, 0
      %p260 = por %p258, %p259
      %p261 = scmp.ne.s32.totalorder %s250, %s253
      %p262 = scmp.eq.s32.totalorder %s25, 3
      %p263 = por %p261, %p262
      %p264 = scmp.ne.s32.totalorder %s253, %s254
      %p265 = scmp.eq.s32.totalorder %s25, 0
      %p266 = por %p264, %p265
      %p267 = scmp.ne.s32.totalorder %s253, %s254
      %p268 = scmp.eq.s32.totalorder %s26, 3
      %p269 = por %p267, %p268
      %p271 = scmp.ne.s32.totalorder %s254, %s270
      %p272 = scmp.eq.s32.totalorder %s26, 0
      %p273 = por %p271, %p272
      %s274 = ssub.s32 %s28, %s35
      %p275 = scmp.eq.s32.totalorder %s274, 0
      %s277 = sadd.s32 %s276, 1
      %s278 = scalar_select %p275, %s276, %s277
      %p281 = pneg %p275
      %p282 = scmp.eq.s32.totalorder %s20, 3
      %p283 = por %p281, %p282
      %p284 = scmp.ne.s32.totalorder %s276, %s279
      %p285 = scmp.eq.s32.totalorder %s20, 0
      %p286 = por %p284, %p285
      %p287 = scmp.ne.s32.totalorder %s276, %s279
      %p288 = scmp.eq.s32.totalorder %s25, 3
      %p289 = por %p287, %p288
      %p290 = scmp.ne.s32.totalorder %s279, %s280
      %p291 = scmp.eq.s32.totalorder %s25, 0
      %p292 = por %p290, %p291
      %p293 = scmp.ne.s32.totalorder %s279, %s280
      %p294 = scmp.eq.s32.totalorder %s26, 3
      %p295 = por %p293, %p294
      %p297 = scmp.ne.s32.totalorder %s280, %s296
      %p298 = scmp.eq.s32.totalorder %s26, 0
      %p299 = por %p297, %p298
      %s300 = ssub.s32 %s28, %s35
      %p301 = scmp.eq.s32.totalorder %s300, 0
      %s303 = sadd.s32 %s302, 1
      %s304 = scalar_select %p301, %s302, %s303
      %p307 = pneg %p301
      %p308 = scmp.eq.s32.totalorder %s20, 3
      %p309 = por %p307, %p308
      %p310 = scmp.ne.s32.totalorder %s302, %s305
      %p311 = scmp.eq.s32.totalorder %s20, 0
      %p312 = por %p310, %p311
      %p313 = scmp.ne.s32.totalorder %s302, %s305
      %p314 = scmp.eq.s32.totalorder %s25, 3
      %p315 = por %p313, %p314
      %p316 = scmp.ne.s32.totalorder %s305, %s306
      %p317 = scmp.eq.s32.totalorder %s25, 0
      %p318 = por %p316, %p317
      %p319 = scmp.ne.s32.totalorder %s305, %s306
      %p320 = scmp.eq.s32.totalorder %s26, 3
      %p321 = por %p319, %p320
      %p323 = scmp.ne.s32.totalorder %s306, %s322
      %p324 = scmp.eq.s32.totalorder %s26, 0
      %p325 = por %p323, %p324
      %s326 = ssub.s32 %s27, %s39
      %p327 = scmp.eq.s32.totalorder %s326, 0
      %s329 = sadd.s32 %s328, 1
      %s330 = scalar_select %p327, %s328, %s329
      %p333 = pneg %p327
      %p334 = scmp.eq.s32.totalorder %s20, 3
      %p335 = por %p333, %p334
      %p336 = scmp.ne.s32.totalorder %s328, %s331
      %p337 = scmp.eq.s32.totalorder %s20, 0
      %p338 = por %p336, %p337
      %p339 = scmp.ne.s32.totalorder %s328, %s331
      %p340 = scmp.eq.s32.totalorder %s25, 3
      %p341 = por %p339, %p340
      %p342 = scmp.ne.s32.totalorder %s331, %s332
      %p343 = scmp.eq.s32.totalorder %s25, 0
      %p344 = por %p342, %p343
      %p345 = scmp.ne.s32.totalorder %s331, %s332
      %p346 = scmp.eq.s32.totalorder %s26, 3
      %p347 = por %p345, %p346
      %p349 = scmp.ne.s32.totalorder %s332, %s348
      %p350 = scmp.eq.s32.totalorder %s26, 0
      %p351 = por %p349, %p350
      %p352 = scmp.le.s32.totalorder 1, %s20
      %p353 = scmp.lt.s32.totalorder %s20, 5
      %p354 = pnand %p352, %p353
      %p355 = pneg %p354
      // Predicated region
      $region9: #{tpu_custom_call.1} parent=5 // pred_check
        _
      $region10: #{tpu_custom_call.1} parent=5 // pred_check_branch
        %357 = sbr.rel (%p354) target = $region12
      $region11: #{tpu_custom_call.1} parent=5 // pred_region
        %s358 = ssub.s32 %s20, 1
      $region12: #{tpu_custom_call.1} parent=5 // pred_fallthru
        _
      %p359 = scmp.lt.s32.totalorder %s20, 4
      // Predicated region
      $region13: #{tpu_custom_call.1} parent=5 // pred_check
        %p360 = pneg %p359
      $region14: #{tpu_custom_call.1} parent=5 // pred_check_branch
        %362 = sbr.rel (%p360) target = $region16
      $region15: #{tpu_custom_call.1} parent=5 // pred_region
        // Predicated region
        $region17: #{tpu_custom_call.1} parent=15 // pred_check
          %p363 = pneg %p52
        $region18: #{tpu_custom_call.1} parent=15 // pred_check_branch
          %365 = sbr.rel (%p363) target = $region20
        $region19: #{tpu_custom_call.1} parent=15 // pred_region
          %p366 = scmp.lt.s32.totalorder %s27, 1
          %s367 = scalar_select %p366, %s27, 1
          %s368 = smul.addr %s367, 8
          %s369 = scalar_lea.vmem %s0, %s368
        $region20: #{tpu_custom_call.1} parent=15 // pred_fallthru
          _
        // Predicated region
        $region21: #{tpu_custom_call.1} parent=15 // pred_check
          %p370 = pneg %p78
        $region22: #{tpu_custom_call.1} parent=15 // pred_check_branch
          %372 = sbr.rel (%p370) target = $region24
        $region23: #{tpu_custom_call.1} parent=15 // pred_region
          %p373 = scmp.lt.s32.totalorder %s28, 1
          %s374 = scalar_select %p373, %s28, 1
          %s375 = scalar_lea.vmem %s1, %s374
        $region24: #{tpu_custom_call.1} parent=15 // pred_fallthru
          _
        // Predicated region
        $region25: #{tpu_custom_call.1} parent=15 // pred_check
          %p376 = pneg %p104
        $region26: #{tpu_custom_call.1} parent=15 // pred_check_branch
          %378 = sbr.rel (%p376) target = $region28
        $region27: #{tpu_custom_call.1} parent=15 // pred_region
          %p379 = scmp.lt.s32.totalorder %s28, 1
          %s380 = scalar_select %p379, %s28, 1
          %s381 = scalar_lea.vmem %s2, %s380
        $region28: #{tpu_custom_call.1} parent=15 // pred_fallthru
          _
        // Predicated region
        $region29: #{tpu_custom_call.1} parent=15 // pred_check
          %p382 = pneg %p130
        $region30: #{tpu_custom_call.1} parent=15 // pred_check_branch
          %384 = sbr.rel (%p382) target = $region32
        $region31: #{tpu_custom_call.1} parent=15 // pred_region
          %p385 = scmp.lt.s32.totalorder %s28, 1
          %s386 = scalar_select %p385, %s28, 1
          %s387 = smul.addr %s386, 4
          %s388 = smul.addr %s387, 4
          %s389 = scalar_lea.vmem %s3, %s388
        $region32: #{tpu_custom_call.1} parent=15 // pred_fallthru
          _
        // Predicated region
        $region33: #{tpu_custom_call.1} parent=15 // pred_check
          %p390 = pneg %p156
        $region34: #{tpu_custom_call.1} parent=15 // pred_check_branch
          %392 = sbr.rel (%p390) target = $region36
        $region35: #{tpu_custom_call.1} parent=15 // pred_region
          %p393 = scmp.lt.s32.totalorder %s28, 1
          %s394 = scalar_select %p393, %s28, 1
          %s395 = scalar_lea.vmem %s4, %s394
        $region36: #{tpu_custom_call.1} parent=15 // pred_fallthru
          _
        // Predicated region
        $region37: #{tpu_custom_call.1} parent=15 // pred_check
          %p396 = pneg %p182
        $region38: #{tpu_custom_call.1} parent=15 // pred_check_branch
          %398 = sbr.rel (%p396) target = $region40
        $region39: #{tpu_custom_call.1} parent=15 // pred_region
          %p399 = scmp.lt.s32.totalorder %s28, 1
          %s400 = scalar_select %p399, %s28, 1
          %s401 = scalar_lea.vmem %s5, %s400
        $region40: #{tpu_custom_call.1} parent=15 // pred_fallthru
          _
        // Predicated region
        $region41: #{tpu_custom_call.1} parent=15 // pred_check
          %p402 = pneg %p208
        $region42: #{tpu_custom_call.1} parent=15 // pred_check_branch
          %404 = sbr.rel (%p402) target = $region44
        $region43: #{tpu_custom_call.1} parent=15 // pred_region
          %p405 = scmp.lt.s32.totalorder %s28, 1
          %s406 = scalar_select %p405, %s28, 1
          %s407 = scalar_lea.vmem %s6, %s406
        $region44: #{tpu_custom_call.1} parent=15 // pred_fallthru
          _
        // Predicated region
        $region45: #{tpu_custom_call.1} parent=15 // pred_check
          %p408 = pneg %p234
        $region46: #{tpu_custom_call.1} parent=15 // pred_check_branch
          %410 = sbr.rel (%p408) target = $region48
        $region47: #{tpu_custom_call.1} parent=15 // pred_region
          %p411 = scmp.lt.s32.totalorder %s28, 1
          %s412 = scalar_select %p411, %s28, 1
          %s413 = smul.addr %s412, 4
          %s414 = smul.addr %s413, 4
          %s415 = scalar_lea.vmem %s7, %s414
        $region48: #{tpu_custom_call.1} parent=15 // pred_fallthru
          _
        // Predicated region
        $region49: #{tpu_custom_call.1} parent=15 // pred_check
          %p416 = pneg %p260
        $region50: #{tpu_custom_call.1} parent=15 // pred_check_branch
          %418 = sbr.rel (%p416) target = $region52
        $region51: #{tpu_custom_call.1} parent=15 // pred_region
          %p419 = scmp.lt.s32.totalorder %s28, 1
          %s420 = scalar_select %p419, %s28, 1
          %s421 = scalar_lea.vmem %s8, %s420
        $region52: #{tpu_custom_call.1} parent=15 // pred_fallthru
          _
        // Predicated region
        $region53: #{tpu_custom_call.1} parent=15 // pred_check
          %p422 = pneg %p286
        $region54: #{tpu_custom_call.1} parent=15 // pred_check_branch
          %424 = sbr.rel (%p422) target = $region56
        $region55: #{tpu_custom_call.1} parent=15 // pred_region
          %p425 = scmp.lt.s32.totalorder %s28, 1
          %s426 = scalar_select %p425, %s28, 1
          %s427 = smul.addr %s426, 8
          %s428 = smul.addr %s427, 4
          %s429 = scalar_lea.vmem %s9, %s428
        $region56: #{tpu_custom_call.1} parent=15 // pred_fallthru
          _
        // Predicated region
        $region57: #{tpu_custom_call.1} parent=15 // pred_check
          %p430 = pneg %p312
        $region58: #{tpu_custom_call.1} parent=15 // pred_check_branch
          %432 = sbr.rel (%p430) target = $region60
        $region59: #{tpu_custom_call.1} parent=15 // pred_region
          %p433 = scmp.lt.s32.totalorder %s28, 1
          %s434 = scalar_select %p433, %s28, 1
          %s435 = scalar_lea.vmem %s10, %s434
        $region60: #{tpu_custom_call.1} parent=15 // pred_fallthru
          _
      $region16: #{tpu_custom_call.1} parent=5 // pred_fallthru
        _
      %p436 = scmp.le.s32.totalorder 1, %s20
      %p437 = scmp.lt.s32.totalorder %s20, 5
      %p438 = pnand %p436, %p437
      %p439 = pneg %p438
      // Predicated region
      $region61: #{tpu_custom_call.1} parent=5 // pred_check
        _
      $region62: #{tpu_custom_call.1} parent=5 // pred_check_branch
        %441 = sbr.rel (%p438) target = $region64
      $region63: #{tpu_custom_call.1} parent=5 // pred_region
        %s442 = ssub.s32 %s20, 1
        %p443 = scmp.lt.s32.totalorder %s29, 1
        %s444 = scalar_select %p443, %s29, 1
        %s445 = smul.addr %s444, 8
        %s446 = scalar_lea.vmem %s0, %s445
        %p447 = pneg %p58
        %p448 = pneg %p55
        %p449 = scmp.lt.s32.totalorder %s30, 1
        %s450 = scalar_select %p449, %s30, 1
        %s451 = scalar_lea.vmem %s1, %s450
        %p452 = pneg %p84
        %p453 = pneg %p81
        %p454 = scmp.lt.s32.totalorder %s30, 1
        %s455 = scalar_select %p454, %s30, 1
        %s456 = scalar_lea.vmem %s2, %s455
        %p457 = pneg %p110
        %p458 = pneg %p107
        %p459 = scmp.lt.s32.totalorder %s30, 1
        %s460 = scalar_select %p459, %s30, 1
        %s461 = smul.addr %s460, 4
        %s462 = smul.addr %s461, 4
        %s463 = scalar_lea.vmem %s3, %s462
        %p464 = pneg %p136
        %p465 = pneg %p133
        %p466 = scmp.lt.s32.totalorder %s30, 1
        %s467 = scalar_select %p466, %s30, 1
        %s468 = scalar_lea.vmem %s4, %s467
        %p469 = pneg %p162
        %p470 = pneg %p159
        %p471 = scmp.lt.s32.totalorder %s30, 1
        %s472 = scalar_select %p471, %s30, 1
        %s473 = scalar_lea.vmem %s5, %s472
        %p474 = pneg %p188
        %p475 = pneg %p185
        %p476 = scmp.lt.s32.totalorder %s30, 1
        %s477 = scalar_select %p476, %s30, 1
        %s478 = scalar_lea.vmem %s6, %s477
        %p479 = pneg %p214
        %p480 = pneg %p211
        %p481 = scmp.lt.s32.totalorder %s30, 1
        %s482 = scalar_select %p481, %s30, 1
        %s483 = smul.addr %s482, 4
        %s484 = smul.addr %s483, 4
        %s485 = scalar_lea.vmem %s7, %s484
        %p486 = pneg %p240
        %p487 = pneg %p237
        %p488 = scmp.lt.s32.totalorder %s30, 1
        %s489 = scalar_select %p488, %s30, 1
        %s490 = scalar_lea.vmem %s8, %s489
        %p491 = pneg %p266
        %p492 = pneg %p263
        %p493 = scmp.lt.s32.totalorder %s30, 1
        %s494 = scalar_select %p493, %s30, 1
        %s495 = smul.addr %s494, 8
        %s496 = smul.addr %s495, 4
        %s497 = scalar_lea.vmem %s9, %s496
        %p498 = pneg %p292
        %p499 = pneg %p289
        %p500 = scmp.lt.s32.totalorder %s30, 1
        %s501 = scalar_select %p500, %s30, 1
        %s502 = scalar_lea.vmem %s10, %s501
        %p503 = pneg %p318
        %p504 = pneg %p315
        %p505 = pneg %p344
        %p506 = pneg %p341
        %s507 = sand.u32 %s331, 1
        %s508 = scalar_lea.sflag [#allocation5], %s507
        %s509 = sand.u32 %s331, 1
        %s510 = smul.addr %s509, 8
        %s511 = scalar_lea.vmem [#allocation4], %s510
        %p512 = scmp.lt.s32.totalorder %s29, 1
        %s513 = scalar_select %p512, %s29, 1
        %s514 = smul.addr %s513, 8
        %s515 = scalar_lea.vmem %s0, %s514
        %p516 = scmp.lt.s32.totalorder %s30, 1
        %s517 = scalar_select %p516, %s30, 1
        %s518 = scalar_lea.vmem %s1, %s517
        %p519 = scmp.lt.s32.totalorder %s30, 1
        %s520 = scalar_select %p519, %s30, 1
        %s521 = scalar_lea.vmem %s2, %s520
        %p522 = scmp.lt.s32.totalorder %s30, 1
        %s523 = scalar_select %p522, %s30, 1
        %s524 = smul.addr %s523, 4
        %s525 = smul.addr %s524, 4
        %s526 = scalar_lea.vmem %s3, %s525
        %p527 = scmp.lt.s32.totalorder %s30, 1
        %s528 = scalar_select %p527, %s30, 1
        %s529 = scalar_lea.vmem %s4, %s528
        %p530 = scmp.lt.s32.totalorder %s30, 1
        %s531 = scalar_select %p530, %s30, 1
        %s532 = scalar_lea.vmem %s5, %s531
        %p533 = scmp.lt.s32.totalorder %s30, 1
        %s534 = scalar_select %p533, %s30, 1
        %s535 = scalar_lea.vmem %s6, %s534
        %p536 = scmp.lt.s32.totalorder %s30, 1
        %s537 = scalar_select %p536, %s30, 1
        %s538 = smul.addr %s537, 4
        %s539 = smul.addr %s538, 4
        %s540 = scalar_lea.vmem %s7, %s539
        %p541 = scmp.lt.s32.totalorder %s30, 1
        %s542 = scalar_select %p541, %s30, 1
        %s543 = scalar_lea.vmem %s8, %s542
        %p544 = scmp.lt.s32.totalorder %s30, 1
        %s545 = scalar_select %p544, %s30, 1
        %s546 = smul.addr %s545, 8
        %s547 = smul.addr %s546, 4
        %s548 = scalar_lea.vmem %s9, %s547
        %p549 = scmp.lt.s32.totalorder %s30, 1
        %s550 = scalar_select %p549, %s30, 1
        %s551 = scalar_lea.vmem %s10, %s550
        %p553 = scmp.eq.s32.totalorder %s30, 0
        // Predicated region
        $region65: #{tpu_custom_call.1} parent=63 // pred_check
          %p554 = pneg %p553
        $region66: #{tpu_custom_call.1} parent=63 // pred_check_branch
          %556 = sbr.rel (%p554) target = $region68
        $region67: #{tpu_custom_call.1} parent=63 // pred_region
          %v557 = vld [vmem:[%s515] sm:$0xff]
          %vm558 = vcmask 261120
          %559 = vst.msk [vmem:[#allocation2] sm:$0xff] %vm558, %v557
        $region68: #{tpu_custom_call.1} parent=63 // pred_fallthru
          _
        %v560 = vld [vmem:[#allocation2] sm:$0xff]
        %v561 = vld [vmem:[%s518] sm:$0x1]
        %v562 = vld [vmem:[%s521] sm:$0x1]
        %vm563 = vcmask 261120
        %v564 = vsel %vm563, %v560, 0.0
        %565 = vadd.xlane.f32.xlu0 %v564
        %v566 = vpop.xlane.xlu0 %565
        %v567 = vrcp.pop 32.0
        %v568 = vmul.f32 %v566, %v567
        %v569 = vsub.f32 %v560, %v568
        %v570 = vmul.f32 %v569, %v569
        %v571 = vsel %vm563, %v570, 0.0
        %572 = vadd.xlane.f32.xlu0 %v571
        %v573 = vpop.xlane.xlu0 %572
        %v574 = vmul.f32 %v573, %v567
        %v575 = vadd.f32 %v574, 1e-05
        %v576 = vrsqrt.pop %v575
        %v577 = vmul.f32 %v569, %v576
        %v579 = vlaneseq
        %v580 = vshrl.u32 %v579, 7
        %v581 = vsub.s32 0, %v580
        %v582 = vrot.slane %v561, %v581
        %v584 = vmul.f32 %v577, %v582
        %v586 = vlaneseq
        %v587 = vshrl.u32 %v586, 7
        %v588 = vsub.s32 0, %v587
        %v589 = vrot.slane %v562, %v588
        %v591 = vadd.f32 %v584, %v589
        %v592 = vpack.c.bf16 %v591, %v591
        %v593 = vld [vmem:[%s526] sm:$0xf]
        %v594 = vld [vmem:[%s526 + $0x4] sm:$0xf]
        %v595 = vld [vmem:[%s526 + $0x8] sm:$0xf]
        %v596 = vld [vmem:[%s526 + $0xc] sm:$0xf]
        %v597 = vld [vmem:[%s529] sm:$0x1]
        %v599 = vlaneseq
        %v600 = vshrl.u32 %v599, 7
        %v601 = vsub.s32 0, %v600
        %v602 = vrot.slane %v597, %v601
        %v608 = vunpack.c.l.b16 %v593
        %v609 = vunpack.c.l.b16 %v594
        %v610 = vunpack.c.l.b16 %v595
        %v611 = vunpack.c.l.b16 %v596
        %v612 = vpack.c.b16 %v609, %v608
        %v613 = vpack.c.b16 %v611, %v610
        %v617 = vsel %vm563, %v592, 0
        %619 = vmatprep.subr.bf16.mxu0 0
        %620 = vmatpush1.bf16.msra.mxu0 %v612
        %621 = vmatprep.subr.bf16.mxu0 0
        %622 = vmatpush1.bf16.msra.mxu0 %v613
        %623 = vmatprep.subr.bf16.mxu0 0
        %624 = vmatpush1.bf16.msra.mxu0 0
        %625 = vmatprep.subr.bf16.mxu0 0
        %626 = vmatpush1.bf16.msra.mxu0 0
        %627 = vmatprep.subr.bf16.mxu0 0
        %628 = vmatpush1.bf16.msra.mxu0 0
        %629 = vmatprep.subr.bf16.mxu0 0
        %630 = vmatpush1.bf16.msra.mxu0 0
        %631 = vmatprep.subr.bf16.mxu0 0
        %632 = vmatpush1.bf16.msra.mxu0 0
        %633 = vmatprep.subr.bf16.mxu0 0
        %634 = vmatpush1.bf16.msra.mxu0 0
        %635 = vmatprep.subr.bf16.mxu0 0
        %636 = vmatpush1.bf16.msra.mxu0 0
        %637 = vmatprep.subr.bf16.mxu0 0
        %638 = vmatpush1.bf16.msra.mxu0 0
        %639 = vmatprep.subr.bf16.mxu0 0
        %640 = vmatpush1.bf16.msra.mxu0 0
        %641 = vmatprep.subr.bf16.mxu0 0
        %642 = vmatpush1.bf16.msra.mxu0 0
        %643 = vmatprep.subr.bf16.mxu0 0
        %644 = vmatpush1.bf16.msra.mxu0 0
        %645 = vmatprep.subr.bf16.mxu0 0
        %646 = vmatpush1.bf16.msra.mxu0 0
        %647 = vmatprep.subr.bf16.mxu0 0
        %648 = vmatpush1.bf16.msra.mxu0 0
        %649 = vmatprep.subr.bf16.mxu0 0
        %650 = vmatpush1.bf16.msra.mxu0 0
        %651 = vmatprep.mubr.bf16.mxu0 0
        %652 = vmatmul.mubr.bf16.gmra.mrb[0].mxu0 %v617
        %v653 = vpop.f32.mrb[0].mxu0
        %v654 = vadd.f32 %v602, %v653
        %v655 = vpop.f32.mrb[0].mxu0
        %v656 = vpop.f32.mrb[0].mxu0
        %v657 = vpop.f32.mrb[0].mxu0
        %658 = vdwg.mxu0
        %v659 = vpack.c.bf16 %v654, %v654
        %v660 = vlaneseq
        %v661 = vshrl.u32 %v660, 7
        %v662 = vlaneseq
        %v663 = vand.u32 %v662, 127
        %vm664 = vcmp.lt.s32.totalorder %v663, %v661
        %666 = vrot.lane.b32.xlu0 %v659, 96
        %v667 = vpop.permute.xlu0 %666
        %vm668 = vcmask 64512
        %v670 = vsel %vm668, %v659, 0
        %v673 = vsel %vm668, %v667, 0
        %675 = vmatprep.subr.bf16.mxu0 0
        %676 = vmatpush1.bf16.xpose.msra.mxu0 %v673
        %677 = vmatprep.subr.bf16.mxu0 0
        %678 = vmatpush1.bf16.xpose.msra.mxu0 0
        %679 = vmatprep.subr.bf16.mxu0 0
        %680 = vmatpush1.bf16.xpose.msra.mxu0 0
        %681 = vmatprep.subr.bf16.mxu0 0
        %682 = vmatpush1.bf16.xpose.msra.mxu0 0
        %683 = vmatprep.subr.bf16.mxu0 0
        %684 = vmatpush1.bf16.xpose.msra.mxu0 0
        %685 = vmatprep.subr.bf16.mxu0 0
        %686 = vmatpush1.bf16.xpose.msra.mxu0 0
        %687 = vmatprep.subr.bf16.mxu0 0
        %688 = vmatpush1.bf16.xpose.msra.mxu0 0
        %689 = vmatprep.subr.bf16.mxu0 0
        %690 = vmatpush1.bf16.xpose.msra.mxu0 0
        %691 = vmatprep.subr.bf16.mxu0 0
        %692 = vmatpush1.bf16.xpose.msra.mxu0 0
        %693 = vmatprep.subr.bf16.mxu0 0
        %694 = vmatpush1.bf16.xpose.msra.mxu0 0
        %695 = vmatprep.subr.bf16.mxu0 0
        %696 = vmatpush1.bf16.xpose.msra.mxu0 0
        %697 = vmatprep.subr.bf16.mxu0 0
        %698 = vmatpush1.bf16.xpose.msra.mxu0 0
        %699 = vmatprep.subr.bf16.mxu0 0
        %700 = vmatpush1.bf16.xpose.msra.mxu0 0
        %701 = vmatprep.subr.bf16.mxu0 0
        %702 = vmatpush1.bf16.xpose.msra.mxu0 0
        %703 = vmatprep.subr.bf16.mxu0 0
        %704 = vmatpush1.bf16.xpose.msra.mxu0 0
        %705 = vmatprep.subr.bf16.mxu0 0
        %706 = vmatpush1.bf16.xpose.msra.mxu0 0
        %707 = vmatprep.mubr.bf16.mxu0 0
        %708 = vmatmul.mubr.bf16.gmra.mrb[0].mxu0 %v670
        %v709 = vpop.f32.mrb[0].mxu0
        %v710 = vadd.f32 0.0, %v709
        %v711 = vpop.f32.mrb[0].mxu0
        %v712 = vpop.f32.mrb[0].mxu0
        %v713 = vpop.f32.mrb[0].mxu0
        %714 = vdwg.mxu0
        %v715 = vmul.f32 %v710, 0.17677669
        %v716 = vsel %vm664, -inf, %v715
        %v717 = vsel %vm668, %v716, -inf
        %718 = vmax.xlane.f32.xlu0 %v717
        %v719 = vpop.xlane.xlu0 %718
        %v720 = vsub.f32 %v716, %v719
        %v721 = vmul.f32 %v720, 1.442695
        %v722 = vpow.pop %v721
        %v723 = vsel %vm668, %v722, 0.0
        %724 = vadd.xlane.f32.xlu0 %v723
        %v725 = vpop.xlane.xlu0 %724
        %v726 = vrcp.pop %v725
        %v727 = vmul.f32 %v722, %v726
        %v728 = vpack.c.bf16 %v727, %v727
        %729 = vrot.lane.b32.xlu0 %v659, 64
        %v730 = vpop.permute.xlu0 %729
        %v732 = vsel %vm668, %v728, 0
        %vm734 = vcmask 1043456
        %v736 = vsel %vm734, %v730, 0
        %738 = vmatprep.subr.bf16.mxu0 0
        %739 = vmatpush1.bf16.msra.mxu0 %v736
        %740 = vmatprep.subr.bf16.mxu0 0
        %741 = vmatpush1.bf16.msra.mxu0 0
        %742 = vmatprep.subr.bf16.mxu0 0
        %743 = vmatpush1.bf16.msra.mxu0 0
        %744 = vmatprep.subr.bf16.mxu0 0
        %745 = vmatpush1.bf16.msra.mxu0 0
        %746 = vmatprep.subr.bf16.mxu0 0
        %747 = vmatpush1.bf16.msra.mxu0 0
        %748 = vmatprep.subr.bf16.mxu0 0
        %749 = vmatpush1.bf16.msra.mxu0 0
        %750 = vmatprep.subr.bf16.mxu0 0
        %751 = vmatpush1.bf16.msra.mxu0 0
        %752 = vmatprep.subr.bf16.mxu0 0
        %753 = vmatpush1.bf16.msra.mxu0 0
        %754 = vmatprep.subr.bf16.mxu0 0
        %755 = vmatpush1.bf16.msra.mxu0 0
        %756 = vmatprep.subr.bf16.mxu0 0
        %757 = vmatpush1.bf16.msra.mxu0 0
        %758 = vmatprep.subr.bf16.mxu0 0
        %759 = vmatpush1.bf16.msra.mxu0 0
        %760 = vmatprep.subr.bf16.mxu0 0
        %761 = vmatpush1.bf16.msra.mxu0 0
        %762 = vmatprep.subr.bf16.mxu0 0
        %763 = vmatpush1.bf16.msra.mxu0 0
        %764 = vmatprep.subr.bf16.mxu0 0
        %765 = vmatpush1.bf16.msra.mxu0 0
        %766 = vmatprep.subr.bf16.mxu0 0
        %767 = vmatpush1.bf16.msra.mxu0 0
        %768 = vmatprep.subr.bf16.mxu0 0
        %769 = vmatpush1.bf16.msra.mxu0 0
        %770 = vmatprep.mubr.bf16.mxu0 0
        %771 = vmatmul.mubr.bf16.gmra.mrb[0].mxu0 %v732
        %v772 = vpop.f32.mrb[0].mxu0
        %v773 = vadd.f32 0.0, %v772
        %v774 = vpop.f32.mrb[0].mxu0
        %v775 = vpop.f32.mrb[0].mxu0
        %v776 = vpop.f32.mrb[0].mxu0
        %777 = vdwg.mxu0
        %778 = vst.msk [vmem:[#allocation3] sm:$0xff] %vm668, %v773
        %779 = vrot.lane.b32.xlu0 %v659, 120
        %v780 = vpop.permute.xlu0 %779
        %781 = vrot.lane.b32.xlu0 %v659, 88
        %v782 = vpop.permute.xlu0 %781
        %v784 = vsel %vm668, %v780, 0
        %v787 = vsel %vm668, %v782, 0
        %789 = vmatprep.subr.bf16.mxu0 0
        %790 = vmatpush1.bf16.xpose.msra.mxu0 %v787
        %791 = vmatprep.subr.bf16.mxu0 0
        %792 = vmatpush1.bf16.xpose.msra.mxu0 0
        %793 = vmatprep.subr.bf16.mxu0 0
        %794 = vmatpush1.bf16.xpose.msra.mxu0 0
        %795 = vmatprep.subr.bf16.mxu0 0
        %796 = vmatpush1.bf16.xpose.msra.mxu0 0
        %797 = vmatprep.subr.bf16.mxu0 0
        %798 = vmatpush1.bf16.xpose.msra.mxu0 0
        %799 = vmatprep.subr.bf16.mxu0 0
        %800 = vmatpush1.bf16.xpose.msra.mxu0 0
        %801 = vmatprep.subr.bf16.mxu0 0
        %802 = vmatpush1.bf16.xpose.msra.mxu0 0
        %803 = vmatprep.subr.bf16.mxu0 0
        %804 = vmatpush1.bf16.xpose.msra.mxu0 0
        %805 = vmatprep.subr.bf16.mxu0 0
        %806 = vmatpush1.bf16.xpose.msra.mxu0 0
        %807 = vmatprep.subr.bf16.mxu0 0
        %808 = vmatpush1.bf16.xpose.msra.mxu0 0
        %809 = vmatprep.subr.bf16.mxu0 0
        %810 = vmatpush1.bf16.xpose.msra.mxu0 0
        %811 = vmatprep.subr.bf16.mxu0 0
        %812 = vmatpush1.bf16.xpose.msra.mxu0 0
        %813 = vmatprep.subr.bf16.mxu0 0
        %814 = vmatpush1.bf16.xpose.msra.mxu0 0
        %815 = vmatprep.subr.bf16.mxu0 0
        %816 = vmatpush1.bf16.xpose.msra.mxu0 0
        %817 = vmatprep.subr.bf16.mxu0 0
        %818 = vmatpush1.bf16.xpose.msra.mxu0 0
        %819 = vmatprep.subr.bf16.mxu0 0
        %820 = vmatpush1.bf16.xpose.msra.mxu0 0
        %821 = vmatprep.mubr.bf16.mxu0 0
        %822 = vmatmul.mubr.bf16.gmra.mrb[0].mxu0 %v784
        %v823 = vpop.f32.mrb[0].mxu0
        %v824 = vadd.f32 0.0, %v823
        %v825 = vpop.f32.mrb[0].mxu0
        %v826 = vpop.f32.mrb[0].mxu0
        %v827 = vpop.f32.mrb[0].mxu0
        %828 = vdwg.mxu0
        %v829 = vmul.f32 %v824, 0.17677669
        %v830 = vsel %vm664, -inf, %v829
        %v831 = vsel %vm668, %v830, -inf
        %832 = vmax.xlane.f32.xlu0 %v831
        %v833 = vpop.xlane.xlu0 %832
        %v834 = vsub.f32 %v830, %v833
        %v835 = vmul.f32 %v834, 1.442695
        %v836 = vpow.pop %v835
        %v837 = vsel %vm668, %v836, 0.0
        %838 = vadd.xlane.f32.xlu0 %v837
        %v839 = vpop.xlane.xlu0 %838
        %v840 = vrcp.pop %v839
        %v841 = vmul.f32 %v836, %v840
        %v842 = vpack.c.bf16 %v841, %v841
        %843 = vrot.lane.b32.xlu0 %v659, 56
        %v844 = vpop.permute.xlu0 %843
        %v846 = vsel %vm668, %v842, 0
        %v849 = vsel %vm734, %v844, 0
        %851 = vmatprep.subr.bf16.mxu0 0
        %852 = vmatpush1.bf16.msra.mxu0 %v849
        %853 = vmatprep.subr.bf16.mxu0 0
        %854 = vmatpush1.bf16.msra.mxu0 0
        %855 = vmatprep.subr.bf16.mxu0 0
        %856 = vmatpush1.bf16.msra.mxu0 0
        %857 = vmatprep.subr.bf16.mxu0 0
        %858 = vmatpush1.bf16.msra.mxu0 0
        %859 = vmatprep.subr.bf16.mxu0 0
        %860 = vmatpush1.bf16.msra.mxu0 0
        %861 = vmatprep.subr.bf16.mxu0 0
        %862 = vmatpush1.bf16.msra.mxu0 0
        %863 = vmatprep.subr.bf16.mxu0 0
        %864 = vmatpush1.bf16.msra.mxu0 0
        %865 = vmatprep.subr.bf16.mxu0 0
        %866 = vmatpush1.bf16.msra.mxu0 0
        %867 = vmatprep.subr.bf16.mxu0 0
        %868 = vmatpush1.bf16.msra.mxu0 0
        %869 = vmatprep.subr.bf16.mxu0 0
        %870 = vmatpush1.bf16.msra.mxu0 0
        %871 = vmatprep.subr.bf16.mxu0 0
        %872 = vmatpush1.bf16.msra.mxu0 0
        %873 = vmatprep.subr.bf16.mxu0 0
        %874 = vmatpush1.bf16.msra.mxu0 0
        %875 = vmatprep.subr.bf16.mxu0 0
        %876 = vmatpush1.bf16.msra.mxu0 0
        %877 = vmatprep.subr.bf16.mxu0 0
        %878 = vmatpush1.bf16.msra.mxu0 0
        %879 = vmatprep.subr.bf16.mxu0 0
        %880 = vmatpush1.bf16.msra.mxu0 0
        %881 = vmatprep.subr.bf16.mxu0 0
        %882 = vmatpush1.bf16.msra.mxu0 0
        %883 = vmatprep.mubr.bf16.mxu0 0
        %884 = vmatmul.mubr.bf16.gmra.mrb[0].mxu0 %v846
        %v885 = vpop.f32.mrb[0].mxu0
        %v886 = vadd.f32 0.0, %v885
        %v887 = vpop.f32.mrb[0].mxu0
        %v888 = vpop.f32.mrb[0].mxu0
        %v889 = vpop.f32.mrb[0].mxu0
        %890 = vdwg.mxu0
        %892 = vrot.lane.b32.xlu0 %v886, 8
        %v893 = vpop.permute.xlu0 %892
        %vm895 = vcmask 130112
        %896 = vst.msk [vmem:[#allocation3] sm:$0xff] %vm895, %v893
        %897 = vrot.lane.b32.xlu0 %v659, 112
        %v898 = vpop.permute.xlu0 %897
        %899 = vrot.lane.b32.xlu0 %v659, 80
        %v900 = vpop.permute.xlu0 %899
        %v902 = vsel %vm668, %v898, 0
        %v905 = vsel %vm668, %v900, 0
        %907 = vmatprep.subr.bf16.mxu0 0
        %908 = vmatpush1.bf16.xpose.msra.mxu0 %v905
        %909 = vmatprep.subr.bf16.mxu0 0
        %910 = vmatpush1.bf16.xpose.msra.mxu0 0
        %911 = vmatprep.subr.bf16.mxu0 0
        %912 = vmatpush1.bf16.xpose.msra.mxu0 0
        %913 = vmatprep.subr.bf16.mxu0 0
        %914 = vmatpush1.bf16.xpose.msra.mxu0 0
        %915 = vmatprep.subr.bf16.mxu0 0
        %916 = vmatpush1.bf16.xpose.msra.mxu0 0
        %917 = vmatprep.subr.bf16.mxu0 0
        %918 = vmatpush1.bf16.xpose.msra.mxu0 0
        %919 = vmatprep.subr.bf16.mxu0 0
        %920 = vmatpush1.bf16.xpose.msra.mxu0 0
        %921 = vmatprep.subr.bf16.mxu0 0
        %922 = vmatpush1.bf16.xpose.msra.mxu0 0
        %923 = vmatprep.subr.bf16.mxu0 0
        %924 = vmatpush1.bf16.xpose.msra.mxu0 0
        %925 = vmatprep.subr.bf16.mxu0 0
        %926 = vmatpush1.bf16.xpose.msra.mxu0 0
        %927 = vmatprep.subr.bf16.mxu0 0
        %928 = vmatpush1.bf16.xpose.msra.mxu0 0
        %929 = vmatprep.subr.bf16.mxu0 0
        %930 = vmatpush1.bf16.xpose.msra.mxu0 0
        %931 = vmatprep.subr.bf16.mxu0 0
        %932 = vmatpush1.bf16.xpose.msra.mxu0 0
        %933 = vmatprep.subr.bf16.mxu0 0
        %934 = vmatpush1.bf16.xpose.msra.mxu0 0
        %935 = vmatprep.subr.bf16.mxu0 0
        %936 = vmatpush1.bf16.xpose.msra.mxu0 0
        %937 = vmatprep.subr.bf16.mxu0 0
        %938 = vmatpush1.bf16.xpose.msra.mxu0 0
        %939 = vmatprep.mubr.bf16.mxu0 0
        %940 = vmatmul.mubr.bf16.gmra.mrb[0].mxu0 %v902
        %v941 = vpop.f32.mrb[0].mxu0
        %v942 = vadd.f32 0.0, %v941
        %v943 = vpop.f32.mrb[0].mxu0
        %v944 = vpop.f32.mrb[0].mxu0
        %v945 = vpop.f32.mrb[0].mxu0
        %946 = vdwg.mxu0
        %v947 = vmul.f32 %v942, 0.17677669
        %v948 = vsel %vm664, -inf, %v947
        %v949 = vsel %vm668, %v948, -inf
        %950 = vmax.xlane.f32.xlu0 %v949
        %v951 = vpop.xlane.xlu0 %950
        %v952 = vsub.f32 %v948, %v951
        %v953 = vmul.f32 %v952, 1.442695
        %v954 = vpow.pop %v953
        %v955 = vsel %vm668, %v954, 0.0
        %956 = vadd.xlane.f32.xlu0 %v955
        %v957 = vpop.xlane.xlu0 %956
        %v958 = vrcp.pop %v957
        %v959 = vmul.f32 %v954, %v958
        %v960 = vpack.c.bf16 %v959, %v959
        %961 = vrot.lane.b32.xlu0 %v659, 48
        %v962 = vpop.permute.xlu0 %961
        %v964 = vsel %vm668, %v960, 0
        %v967 = vsel %vm734, %v962, 0
        %969 = vmatprep.subr.bf16.mxu0 0
        %970 = vmatpush1.bf16.msra.mxu0 %v967
        %971 = vmatprep.subr.bf16.mxu0 0
        %972 = vmatpush1.bf16.msra.mxu0 0
        %973 = vmatprep.subr.bf16.mxu0 0
        %974 = vmatpush1.bf16.msra.mxu0 0
        %975 = vmatprep.subr.bf16.mxu0 0
        %976 = vmatpush1.bf16.msra.mxu0 0
        %977 = vmatprep.subr.bf16.mxu0 0
        %978 = vmatpush1.bf16.msra.mxu0 0
        %979 = vmatprep.subr.bf16.mxu0 0
        %980 = vmatpush1.bf16.msra.mxu0 0
        %981 = vmatprep.subr.bf16.mxu0 0
        %982 = vmatpush1.bf16.msra.mxu0 0
        %983 = vmatprep.subr.bf16.mxu0 0
        %984 = vmatpush1.bf16.msra.mxu0 0
        %985 = vmatprep.subr.bf16.mxu0 0
        %986 = vmatpush1.bf16.msra.mxu0 0
        %987 = vmatprep.subr.bf16.mxu0 0
        %988 = vmatpush1.bf16.msra.mxu0 0
        %989 = vmatprep.subr.bf16.mxu0 0
        %990 = vmatpush1.bf16.msra.mxu0 0
        %991 = vmatprep.subr.bf16.mxu0 0
        %992 = vmatpush1.bf16.msra.mxu0 0
        %993 = vmatprep.subr.bf16.mxu0 0
        %994 = vmatpush1.bf16.msra.mxu0 0
        %995 = vmatprep.subr.bf16.mxu0 0
        %996 = vmatpush1.bf16.msra.mxu0 0
        %997 = vmatprep.subr.bf16.mxu0 0
        %998 = vmatpush1.bf16.msra.mxu0 0
        %999 = vmatprep.subr.bf16.mxu0 0
        %1000 = vmatpush1.bf16.msra.mxu0 0
        %1001 = vmatprep.mubr.bf16.mxu0 0
        %1002 = vmatmul.mubr.bf16.gmra.mrb[0].mxu0 %v964
        %v1003 = vpop.f32.mrb[0].mxu0
        %v1004 = vadd.f32 0.0, %v1003
        %v1005 = vpop.f32.mrb[0].mxu0
        %v1006 = vpop.f32.mrb[0].mxu0
        %v1007 = vpop.f32.mrb[0].mxu0
        %1008 = vdwg.mxu0
        %1010 = vrot.lane.b32.xlu0 %v1004, 16
        %v1011 = vpop.permute.xlu0 %1010
        %vm1013 = vcmask 195712
        %1014 = vst.msk [vmem:[#allocation3] sm:$0xff] %vm1013, %v1011
        %1015 = vrot.lane.b32.xlu0 %v659, 104
        %v1016 = vpop.permute.xlu0 %1015
        %1017 = vrot.lane.b32.xlu0 %v659, 72
        %v1018 = vpop.permute.xlu0 %1017
        %v1020 = vsel %vm668, %v1016, 0
        %v1023 = vsel %vm668, %v1018, 0
        %1025 = vmatprep.subr.bf16.mxu0 0
        %1026 = vmatpush1.bf16.xpose.msra.mxu0 %v1023
        %1027 = vmatprep.subr.bf16.mxu0 0
        %1028 = vmatpush1.bf16.xpose.msra.mxu0 0
        %1029 = vmatprep.subr.bf16.mxu0 0
        %1030 = vmatpush1.bf16.xpose.msra.mxu0 0
        %1031 = vmatprep.subr.bf16.mxu0 0
        %1032 = vmatpush1.bf16.xpose.msra.mxu0 0
        %1033 = vmatprep.subr.bf16.mxu0 0
        %1034 = vmatpush1.bf16.xpose.msra.mxu0 0
        %1035 = vmatprep.subr.bf16.mxu0 0
        %1036 = vmatpush1.bf16.xpose.msra.mxu0 0
        %1037 = vmatprep.subr.bf16.mxu0 0
        %1038 = vmatpush1.bf16.xpose.msra.mxu0 0
        %1039 = vmatprep.subr.bf16.mxu0 0
        %1040 = vmatpush1.bf16.xpose.msra.mxu0 0
        %1041 = vmatprep.subr.bf16.mxu0 0
        %1042 = vmatpush1.bf16.xpose.msra.mxu0 0
        %1043 = vmatprep.subr.bf16.mxu0 0
        %1044 = vmatpush1.bf16.xpose.msra.mxu0 0
        %1045 = vmatprep.subr.bf16.mxu0 0
        %1046 = vmatpush1.bf16.xpose.msra.mxu0 0
        %1047 = vmatprep.subr.bf16.mxu0 0
        %1048 = vmatpush1.bf16.xpose.msra.mxu0 0
        %1049 = vmatprep.subr.bf16.mxu0 0
        %1050 = vmatpush1.bf16.xpose.msra.mxu0 0
        %1051 = vmatprep.subr.bf16.mxu0 0
        %1052 = vmatpush1.bf16.xpose.msra.mxu0 0
        %1053 = vmatprep.subr.bf16.mxu0 0
        %1054 = vmatpush1.bf16.xpose.msra.mxu0 0
        %1055 = vmatprep.subr.bf16.mxu0 0
        %1056 = vmatpush1.bf16.xpose.msra.mxu0 0
        %1057 = vmatprep.mubr.bf16.mxu0 0
        %1058 = vmatmul.mubr.bf16.gmra.mrb[0].mxu0 %v1020
        %v1059 = vpop.f32.mrb[0].mxu0
        %v1060 = vadd.f32 0.0, %v1059
        %v1061 = vpop.f32.mrb[0].mxu0
        %v1062 = vpop.f32.mrb[0].mxu0
        %v1063 = vpop.f32.mrb[0].mxu0
        %1064 = vdwg.mxu0
        %v1065 = vmul.f32 %v1060, 0.17677669
        %v1066 = vsel %vm664, -inf, %v1065
        %v1067 = vsel %vm668, %v1066, -inf
        %1068 = vmax.xlane.f32.xlu0 %v1067
        %v1069 = vpop.xlane.xlu0 %1068
        %v1070 = vsub.f32 %v1066, %v1069
        %v1071 = vmul.f32 %v1070, 1.442695
        %v1072 = vpow.pop %v1071
        %v1073 = vsel %vm668, %v1072, 0.0
        %1074 = vadd.xlane.f32.xlu0 %v1073
        %v1075 = vpop.xlane.xlu0 %1074
        %v1076 = vrcp.pop %v1075
        %v1077 = vmul.f32 %v1072, %v1076
        %v1078 = vpack.c.bf16 %v1077, %v1077
        %1079 = vrot.lane.b32.xlu0 %v659, 40
        %v1080 = vpop.permute.xlu0 %1079
        %v1082 = vsel %vm668, %v1078, 0
        %v1085 = vsel %vm734, %v1080, 0
        %1087 = vmatprep.subr.bf16.mxu0 0
        %1088 = vmatpush1.bf16.msra.mxu0 %v1085
        %1089 = vmatprep.subr.bf16.mxu0 0
        %1090 = vmatpush1.bf16.msra.mxu0 0
        %1091 = vmatprep.subr.bf16.mxu0 0
        %1092 = vmatpush1.bf16.msra.mxu0 0
        %1093 = vmatprep.subr.bf16.mxu0 0
        %1094 = vmatpush1.bf16.msra.mxu0 0
        %1095 = vmatprep.subr.bf16.mxu0 0
        %1096 = vmatpush1.bf16.msra.mxu0 0
        %1097 = vmatprep.subr.bf16.mxu0 0
        %1098 = vmatpush1.bf16.msra.mxu0 0
        %1099 = vmatprep.subr.bf16.mxu0 0
        %1100 = vmatpush1.bf16.msra.mxu0 0
        %1101 = vmatprep.subr.bf16.mxu0 0
        %1102 = vmatpush1.bf16.msra.mxu0 0
        %1103 = vmatprep.subr.bf16.mxu0 0
        %1104 = vmatpush1.bf16.msra.mxu0 0
        %1105 = vmatprep.subr.bf16.mxu0 0
        %1106 = vmatpush1.bf16.msra.mxu0 0
        %1107 = vmatprep.subr.bf16.mxu0 0
        %1108 = vmatpush1.bf16.msra.mxu0 0
        %1109 = vmatprep.subr.bf16.mxu0 0
        %1110 = vmatpush1.bf16.msra.mxu0 0
        %1111 = vmatprep.subr.bf16.mxu0 0
        %1112 = vmatpush1.bf16.msra.mxu0 0
        %1113 = vmatprep.subr.bf16.mxu0 0
        %1114 = vmatpush1.bf16.msra.mxu0 0
        %1115 = vmatprep.subr.bf16.mxu0 0
        %1116 = vmatpush1.bf16.msra.mxu0 0
        %1117 = vmatprep.subr.bf16.mxu0 0
        %1118 = vmatpush1.bf16.msra.mxu0 0
        %1119 = vmatprep.mubr.bf16.mxu0 0
        %1120 = vmatmul.mubr.bf16.gmra.mrb[0].mxu0 %v1082
        %v1121 = vpop.f32.mrb[0].mxu0
        %v1122 = vadd.f32 0.0, %v1121
        %v1123 = vpop.f32.mrb[0].mxu0
        %v1124 = vpop.f32.mrb[0].mxu0
        %v1125 = vpop.f32.mrb[0].mxu0
        %1126 = vdwg.mxu0
        %1128 = vrot.lane.b32.xlu0 %v1122, 24
        %v1129 = vpop.permute.xlu0 %1128
        %vm1131 = vcmask 261312
        %1132 = vst.msk [vmem:[#allocation3] sm:$0xff] %vm1131, %v1129
        %v1133 = vld [vmem:[#allocation3] sm:$0xff]
        %v1134 = vadd.f32 %v1133, %v560
        %v1135 = vld [vmem:[%s532] sm:$0x1]
        %v1136 = vld [vmem:[%s535] sm:$0x1]
        %v1137 = vsel %vm563, %v1134, 0.0
        %1138 = vadd.xlane.f32.xlu0 %v1137
        %v1139 = vpop.xlane.xlu0 %1138
        %v1140 = vmul.f32 %v1139, %v567
        %v1141 = vsub.f32 %v1134, %v1140
        %v1142 = vmul.f32 %v1141, %v1141
        %v1143 = vsel %vm563, %v1142, 0.0
        %1144 = vadd.xlane.f32.xlu0 %v1143
        %v1145 = vpop.xlane.xlu0 %1144
        %v1146 = vmul.f32 %v1145, %v567
        %v1147 = vadd.f32 %v1146, 1e-05
        %v1148 = vrsqrt.pop %v1147
        %v1149 = vmul.f32 %v1141, %v1148
        %v1151 = vlaneseq
        %v1152 = vshrl.u32 %v1151, 7
        %v1153 = vsub.s32 0, %v1152
        %v1154 = vrot.slane %v1135, %v1153
        %v1156 = vmul.f32 %v1149, %v1154
        %v1158 = vlaneseq
        %v1159 = vshrl.u32 %v1158, 7
        %v1160 = vsub.s32 0, %v1159
        %v1161 = vrot.slane %v1136, %v1160
        %v1163 = vadd.f32 %v1156, %v1161
        %v1164 = vpack.c.bf16 %v1163, %v1163
        %v1165 = vld [vmem:[%s540] sm:$0xf]
        %v1166 = vld [vmem:[%s540 + $0x4] sm:$0xf]
        %v1167 = vld [vmem:[%s540 + $0x8] sm:$0xf]
        %v1168 = vld [vmem:[%s540 + $0xc] sm:$0xf]
        %v1169 = vld [vmem:[%s543] sm:$0x1]
        %v1171 = vlaneseq
        %v1172 = vshrl.u32 %v1171, 7
        %v1173 = vsub.s32 0, %v1172
        %v1174 = vrot.slane %v1169, %v1173
        %v1180 = vunpack.c.l.b16 %v1165
        %v1181 = vunpack.c.l.b16 %v1166
        %v1182 = vunpack.c.l.b16 %v1167
        %v1183 = vunpack.c.l.b16 %v1168
        %v1184 = vpack.c.b16 %v1181, %v1180
        %v1185 = vpack.c.b16 %v1183, %v1182
        %v1189 = vsel %vm563, %v1164, 0
        %1191 = vmatprep.subr.bf16.mxu0 0
        %1192 = vmatpush1.bf16.msra.mxu0 %v1184
        %1193 = vmatprep.subr.bf16.mxu0 0
        %1194 = vmatpush1.bf16.msra.mxu0 %v1185
        %1195 = vmatprep.subr.bf16.mxu0 0
        %1196 = vmatpush1.bf16.msra.mxu0 0
        %1197 = vmatprep.subr.bf16.mxu0 0
        %1198 = vmatpush1.bf16.msra.mxu0 0
        %1199 = vmatprep.subr.bf16.mxu0 0
        %1200 = vmatpush1.bf16.msra.mxu0 0
        %1201 = vmatprep.subr.bf16.mxu0 0
        %1202 = vmatpush1.bf16.msra.mxu0 0
        %1203 = vmatprep.subr.bf16.mxu0 0
        %1204 = vmatpush1.bf16.msra.mxu0 0
        %1205 = vmatprep.subr.bf16.mxu0 0
        %1206 = vmatpush1.bf16.msra.mxu0 0
        %1207 = vmatprep.subr.bf16.mxu0 0
        %1208 = vmatpush1.bf16.msra.mxu0 0
        %1209 = vmatprep.subr.bf16.mxu0 0
        %1210 = vmatpush1.bf16.msra.mxu0 0
        %1211 = vmatprep.subr.bf16.mxu0 0
        %1212 = vmatpush1.bf16.msra.mxu0 0
        %1213 = vmatprep.subr.bf16.mxu0 0
        %1214 = vmatpush1.bf16.msra.mxu0 0
        %1215 = vmatprep.subr.bf16.mxu0 0
        %1216 = vmatpush1.bf16.msra.mxu0 0
        %1217 = vmatprep.subr.bf16.mxu0 0
        %1218 = vmatpush1.bf16.msra.mxu0 0
        %1219 = vmatprep.subr.bf16.mxu0 0
        %1220 = vmatpush1.bf16.msra.mxu0 0
        %1221 = vmatprep.subr.bf16.mxu0 0
        %1222 = vmatpush1.bf16.msra.mxu0 0
        %1223 = vmatprep.mubr.bf16.mxu0 0
        %1224 = vmatmul.mubr.bf16.gmra.mrb[0].mxu0 %v1189
        %v1225 = vpop.f32.mrb[0].mxu0
        %v1226 = vadd.f32 %v1174, %v1225
        %v1227 = vpop.f32.mrb[0].mxu0
        %v1228 = vpop.f32.mrb[0].mxu0
        %v1229 = vpop.f32.mrb[0].mxu0
        %1230 = vdwg.mxu0
        %v1231 = vmul.f32 %v1226, 0.5
        %v1232 = vmul.f32 %v1226, %v1226
        %v1233 = vmul.f32 %v1226, %v1232
        %v1234 = vmul.f32 %v1233, 0.044715
        %v1235 = vadd.f32 %v1226, %v1234
        %v1236 = vmul.f32 %v1235, 0.7978846
        %v1237 = vtanh.pop %v1236
        %v1238 = vadd.f32 %v1237, 1.0
        %v1239 = vmul.f32 %v1231, %v1238
        %v1240 = vpack.c.bf16 %v1239, %v1239
        %v1241 = vld [vmem:[%s548] sm:$0xf]
        %v1242 = vld [vmem:[%s548 + $0x4] sm:$0xf]
        %v1243 = vld [vmem:[%s548 + $0x8] sm:$0xf]
        %v1244 = vld [vmem:[%s548 + $0xc] sm:$0xf]
        %v1245 = vld [vmem:[%s548 + $0x10] sm:$0xf]
        %v1246 = vld [vmem:[%s548 + $0x14] sm:$0xf]
        %v1247 = vld [vmem:[%s548 + $0x18] sm:$0xf]
        %v1248 = vld [vmem:[%s548 + $0x1c] sm:$0xf]
        %v1249 = vld [vmem:[%s551] sm:$0x1]
        %v1251 = vlaneseq
        %v1252 = vshrl.u32 %v1251, 7
        %v1253 = vsub.s32 0, %v1252
        %v1254 = vrot.slane %v1249, %v1253
        %v1264 = vunpack.c.l.b16 %v1241
        %v1265 = vunpack.c.l.b16 %v1242
        %v1266 = vunpack.c.l.b16 %v1243
        %v1267 = vunpack.c.l.b16 %v1244
        %v1268 = vunpack.c.l.b16 %v1245
        %v1269 = vunpack.c.l.b16 %v1246
        %v1270 = vunpack.c.l.b16 %v1247
        %v1271 = vunpack.c.l.b16 %v1248
        %v1272 = vpack.c.b16 %v1265, %v1264
        %v1273 = vpack.c.b16 %v1267, %v1266
        %v1274 = vpack.c.b16 %v1269, %v1268
        %v1275 = vpack.c.b16 %v1271, %v1270
        %vm1280 = vcmask 523264
        %v1282 = vsel %vm1280, %v1240, 0
        %1284 = vmatprep.subr.bf16.mxu0 0
        %1285 = vmatpush1.bf16.msra.mxu0 %v1272
        %1286 = vmatprep.subr.bf16.mxu0 0
        %1287 = vmatpush1.bf16.msra.mxu0 %v1273
        %1288 = vmatprep.subr.bf16.mxu0 0
        %1289 = vmatpush1.bf16.msra.mxu0 %v1274
        %1290 = vmatprep.subr.bf16.mxu0 0
        %1291 = vmatpush1.bf16.msra.mxu0 %v1275
        %1292 = vmatprep.subr.bf16.mxu0 0
        %1293 = vmatpush1.bf16.msra.mxu0 0
        %1294 = vmatprep.subr.bf16.mxu0 0
        %1295 = vmatpush1.bf16.msra.mxu0 0
        %1296 = vmatprep.subr.bf16.mxu0 0
        %1297 = vmatpush1.bf16.msra.mxu0 0
        %1298 = vmatprep.subr.bf16.mxu0 0
        %1299 = vmatpush1.bf16.msra.mxu0 0
        %1300 = vmatprep.subr.bf16.mxu0 0
        %1301 = vmatpush1.bf16.msra.mxu0 0
        %1302 = vmatprep.subr.bf16.mxu0 0
        %1303 = vmatpush1.bf16.msra.mxu0 0
        %1304 = vmatprep.subr.bf16.mxu0 0
        %1305 = vmatpush1.bf16.msra.mxu0 0
        %1306 = vmatprep.subr.bf16.mxu0 0
        %1307 = vmatpush1.bf16.msra.mxu0 0
        %1308 = vmatprep.subr.bf16.mxu0 0
        %1309 = vmatpush1.bf16.msra.mxu0 0
        %1310 = vmatprep.subr.bf16.mxu0 0
        %1311 = vmatpush1.bf16.msra.mxu0 0
        %1312 = vmatprep.subr.bf16.mxu0 0
        %1313 = vmatpush1.bf16.msra.mxu0 0
        %1314 = vmatprep.subr.bf16.mxu0 0
        %1315 = vmatpush1.bf16.msra.mxu0 0
        %1316 = vmatprep.mubr.bf16.mxu0 0
        %1317 = vmatmul.mubr.bf16.gmra.mrb[0].mxu0 %v1282
        %v1318 = vpop.f32.mrb[0].mxu0
        %v1319 = vadd.f32 %v1254, %v1318
        %v1320 = vpop.f32.mrb[0].mxu0
        %v1321 = vpop.f32.mrb[0].mxu0
        %v1322 = vpop.f32.mrb[0].mxu0
        %1323 = vdwg.mxu0
        %v1324 = vadd.f32 %v1319, %v1134
        %1325 = vst.msk [vmem:[#allocation2] sm:$0xff] %vm563, %v1324
        %p1326 = scmp.eq.s32.totalorder %s30, 1
        // Predicated region
        $region69: #{tpu_custom_call.1} parent=63 // pred_check
          %p1327 = pneg %p1326
        $region70: #{tpu_custom_call.1} parent=63 // pred_check_branch
          %1329 = sbr.rel (%p1327) target = $region72
        $region71: #{tpu_custom_call.1} parent=63 // pred_region
          %1330 = vst.msk [vmem:[%s511] sm:$0xff] %vm563, %v1324
        $region72: #{tpu_custom_call.1} parent=63 // pred_fallthru
          _
        %s1331 = sand.u32 %s331, 1
        %s1332 = scalar_lea.sflag [#allocation5], %s1331
        %s1333 = sand.u32 %s331, 1
        %s1334 = smul.addr %s1333, 8
        %s1335 = scalar_lea.vmem [#allocation4], %s1334
        // Predicated region
        $region73: #{tpu_custom_call.1} parent=63 // pred_check
          %p1336 = pneg %p341
        $region74: #{tpu_custom_call.1} parent=63 // pred_check_branch
          %1338 = sbr.rel (%p1336) target = $region76
        $region75: #{tpu_custom_call.1} parent=63 // pred_region
          %s1340 = ssub.s32 128, 128
          %1341 = vsyncadd %s1332, %s1340
          %s1342 = smul.addr %s29, 128
          %s1343 = scalar_lea.hbm %s11, %s1342
          %s1345 = sshll.u32 %s1335, 4
          %s1346 = int_to_ptr.vmem [resolvable:$true] %s1345
          %1348 = dma.vmem_to_hbm [thread:$0]  %s1346, 128, %s1343, %s1332
        $region76: #{tpu_custom_call.1} parent=63 // pred_fallthru
          _
      $region64: #{tpu_custom_call.1} parent=5 // pred_fallthru
        _
      %p1349 = scmp.le.s32.totalorder 2, %s20
      // Predicated region
      $region77: #{tpu_custom_call.1} parent=5 // pred_check
        %p1350 = pneg %p1349
      $region78: #{tpu_custom_call.1} parent=5 // pred_check_branch
        %1352 = sbr.rel (%p1350) target = $region80
      $region79: #{tpu_custom_call.1} parent=5 // pred_region
        %s1353 = ssub.s32 %s20, 2
        // Predicated region
        $region81: #{tpu_custom_call.1} parent=79 // pred_check
          %p1354 = pneg %p347
        $region82: #{tpu_custom_call.1} parent=79 // pred_check_branch
          %1356 = sbr.rel (%p1354) target = $region84
        $region83: #{tpu_custom_call.1} parent=79 // pred_region
          %s1357 = sand.u32 %s332, 1
          %s1358 = scalar_lea.sflag [#allocation5], %s1357
          %s1359 = sand.u32 %s332, 1
          %s1360 = smul.addr %s1359, 8
          %s1361 = scalar_lea.vmem [#allocation4], %s1360
          %1362 = dma.done %s1358, 128
        $region84: #{tpu_custom_call.1} parent=79 // pred_fallthru
          _
      $region80: #{tpu_custom_call.1} parent=5 // pred_fallthru
        _
    $region6: #{tpu_custom_call.1} parent=1 // loop_footer
      %s24 = sadd.s32 1, %s20
    $region7: #{tpu_custom_call.1} parent=1 // loop_footer_branch
      %19 = sbr.rel target = $region3
    $region8: #{tpu_custom_call.1} parent=1 // loop_exit
      _
    %1363 = vsyncpa [#allocation5], 1
    %s1364 = scalar_lea.sflag [#allocation5], 1
    %1365 = vsyncpa %s1364, 1

</llo_original>
